<compile_context>
chip_gen: v5e
topology: v5e:2x2
jax: 0.10.0
libtpu: 0.0.40
codegen_flags: <defaults>
</compile_context>

<pallas_src>
import functools

import jax
import jax.numpy as jnp
from jax.experimental import pallas as pl
from jax.experimental.pallas import tpu as pltpu

EPS = 1e-6
NEG_INF = -1e9


def _full(shape):
    """BlockSpec for a parameter identical at every grid step.

    Constant index_map -> the block is DMA'd only when its index changes
    (i.e. once).  TODO(synk): on v7x with large D/F, single-buffer these via
    pipeline_mode=pl.Buffered(1) to halve the constant-weight VMEM footprint.
    """
    return pl.BlockSpec(shape, lambda *_: (0,) * len(shape))


def _layer_norm(x, alpha, bias):
    # Matches the tutorial LayerNormalization: torch .std() is unbiased
    # (correction=1) and eps is added to the std (not the variance).
    # Exact division here (review note): LN reciprocals are only O(rows) values;
    # the approximate EUP reciprocal is reserved for the softmax denominator.
    d = x.shape[-1]
    mean = jnp.mean(x, axis=-1, keepdims=True)
    var = jnp.mean((x - mean) ** 2, axis=-1, keepdims=True)
    std = jnp.sqrt(var * (d / (d - 1.0)))
    return (x - mean) / (std + EPS) * alpha + bias


# --------------------- kernel 1: LN1 + fused QKV projection -------------------
def qkv_kernel(x_ref, ln_a_ref, ln_b_ref, wqkv_ref, q_ref, kv_ref):
    x = x_ref[0]                                        # (TQ, D) f32
    d = x.shape[-1]
    xn = _layer_norm(x, ln_a_ref[...], ln_b_ref[...]).astype(jnp.bfloat16)
    # One MXU weight stream, N = 3D fills the MXU (fused Wq|Wk|Wv).
    qkv = jnp.dot(xn, wqkv_ref[...],
                  preferred_element_type=jnp.float32).astype(jnp.bfloat16)
    # Lane-dense stores at 128-aligned offsets -> full-width unmasked vst.
    q_ref[0] = qkv[:, :d]            # Q (1/sqrt(d_k) already folded into Wq)
    kv_ref[0] = qkv[:, d:]           # K | V


# ----- kernel 2: attention (single softmax) + Wo + residual + LN2 + FFN -------
def attn_ffn_kernel(x_ref, q_ref, kv_ref, mask_ref,
                    wo_ref, ln2_a_ref, ln2_b_ref,
                    w1_ref, b1_ref, w2_ref, b2_ref,
                    o_ref, *, num_heads):
    x = x_ref[0]                                        # (TQ, D) f32
    d = x.shape[-1]
    dk = d // num_heads

    # Padding mask -> additive bias, computed once per (batch, q-tile).
    # Equivalent to masked_fill(-1e9): masked logits underflow to 0 in exp.
    # TODO(synk): a scalar-prefetched per-batch "all-unmasked" flag could skip
    # this where/add entirely for fully unmasked rows.
    bias = jnp.where(mask_ref[0] == 0, jnp.float32(NEG_INF), jnp.float32(0.0))  # (1, S)

    # Per-head attention over the full key/value sequence (kv axis collapsed ->
    # one softmax, no online rescaling / running-stat scratch).  Heads are
    # static lane slices of the lane-dense Q / K|V blocks.
    ctx_parts = []
    for h in range(num_heads):
        lo = h * dk
        qh = q_ref[0, :, lo:lo + dk]                    # (TQ, dk) bf16
        kh = kv_ref[0, :, lo:lo + dk]                   # (S,  dk) bf16
        vh = kv_ref[0, :, d + lo:d + lo + dk]           # (S,  dk) bf16
        s = jax.lax.dot_general(qh, kh, (((1,), (1,)), ((), ())),
                                preferred_element_type=jnp.float32)   # (TQ, S)
        s = s + bias
        m = jnp.max(s, axis=-1, keepdims=True)
        p = jnp.exp(s - m)
        l = jnp.sum(p, axis=-1, keepdims=True)
        ctx_h = jnp.dot(p.astype(jnp.bfloat16), vh,
                        preferred_element_type=jnp.float32)           # (TQ, dk)
        ctx_parts.append(ctx_h * pl.reciprocal(l, approx=True))       # EUP recip
    # Single lane-dim concat, then ONE K=D matmul for W_o (no per-head K=dk
    # matmuls, no cross-head VPU sum, no (H,TQ,D) intermediate).
    ctx = jnp.concatenate(ctx_parts, axis=-1)                         # (TQ, D) f32

    attn = jnp.dot(ctx.astype(jnp.bfloat16), wo_ref[...],
                   preferred_element_type=jnp.float32)                # (TQ, D) f32
    x1 = x + attn                          # residual 0 (dropout == identity)

    xn2 = _layer_norm(x1, ln2_a_ref[...], ln2_b_ref[...])
    h1 = jnp.dot(xn2.astype(jnp.bfloat16), w1_ref[...],
                 preferred_element_type=jnp.float32) + b1_ref[...]
    h1 = jnp.maximum(h1, jnp.float32(0.0))
    ffn = jnp.dot(h1.astype(jnp.bfloat16), w2_ref[...],
                  preferred_element_type=jnp.float32) + b2_ref[...]
    o_ref[0] = x1 + ffn                    # residual 1
    # TODO(synk): optionally emit bf16 / alias x via input_output_aliases to
    # halve the output HBM writeback if downstream accepts bf16 residuals.


# ------------------------------- wrapper --------------------------------------
def _seq_tile(s):
    # Prefer 256 (full v6e/v7x MXU width), then 128; tiny/odd sequences run as a
    # single tile (still satisfies the (8,128)/full-dim BlockSpec rule).
    for t in (256, 128):
        if s % t == 0:
            return t
    return s


def encoder_block(x, src_mask, params, num_heads):
    B, S, D = x.shape
    F = params["w1"].shape[1]
    assert D % num_heads == 0
    dk = D // num_heads
    TQ = _seq_tile(S)
    nq = S // TQ

    bf16 = jnp.bfloat16
    sm_scale = 1.0 / (dk ** 0.5)
    # Fused QKV weight with the 1/sqrt(d_k) scale folded into Wq (zero in-kernel
    # cost).  LN params and FFN biases stay f32.
    wqkv = jnp.concatenate(
        [params["wq"] * sm_scale, params["wk"], params["wv"]], axis=1).astype(bf16)
    wo = params["wo"].astype(bf16)
    w1 = params["w1"].astype(bf16)
    w2 = params["w2"].astype(bf16)

    # Collapsed-kv (single softmax) path: K+V for one batch row must fit VMEM.
    kv_bytes = S * 2 * D * 2      # bf16 K|V per batch row
    assert kv_bytes <= 8 * 1024 * 1024, "sequence too long for single-kv-tile path"
    # TODO(synk): for sequences where K/V no longer fit VMEM, add a flash-style
    # online-softmax loop over kv tiles (innermost 'arbitrary' grid axis).

    vmem_limit = 40 * 1024 * 1024   # under the 64 MiB v7x ceiling with headroom;
                                    # can be raised toward ~96 MiB on v5e/v6e.

    # ---------------- kernel 1: LN1 + fused QKV projection ----------------
    qkv_flops = 2 * B * S * D * (3 * D)
    qkv_bytes = 4 * B * S * D + 2 * D * 3 * D + 2 * B * S * 3 * D + 8 * D
    q_bsd, kv_bsd = pl.pallas_call(
        qkv_kernel,
        out_shape=(jax.ShapeDtypeStruct((B, S, D), bf16),
                   jax.ShapeDtypeStruct((B, S, 2 * D), bf16)),
        grid=(B, nq),
        in_specs=[
            pl.BlockSpec((1, TQ, D), lambda b, i: (b, i, 0)),          # x tile
            _full((1, D)), _full((1, D)),                              # LN1 alpha/bias
            _full((D, 3 * D)),                                         # Wq|Wk|Wv bf16
        ],
        out_specs=(pl.BlockSpec((1, TQ, D), lambda b, i: (b, i, 0)),
                   pl.BlockSpec((1, TQ, 2 * D), lambda b, i: (b, i, 0))),
        compiler_params=pltpu.CompilerParams(
            dimension_semantics=("parallel", "parallel"),
            vmem_limit_bytes=vmem_limit),
        cost_estimate=pl.CostEstimate(flops=int(qkv_flops),
                                      transcendentals=int(B * S),
                                      bytes_accessed=int(qkv_bytes)),
    )(x, params["ln1_a"], params["ln1_b"], wqkv)

    # ------- kernel 2: attention + Wo + residual + LN2 + FFN + residual -------
    attn_flops = B * (4 * S * S * D + 2 * S * D * D + 4 * S * D * F)
    attn_bytes = (4 * B * S * D              # x
                  + 2 * B * S * D            # q
                  + 2 * B * S * 2 * D        # k|v (fetched once per batch)
                  + 4 * B * S                # mask
                  + 2 * (D * D + 2 * D * F) + 4 * (F + 2 * D)   # weights / biases
                  + 4 * B * S * D)           # out
    out = pl.pallas_call(
        functools.partial(attn_ffn_kernel, num_heads=num_heads),
        out_shape=jax.ShapeDtypeStruct((B, S, D), jnp.float32),
        grid=(B, nq),
        in_specs=[
            pl.BlockSpec((1, TQ, D), lambda b, qi: (b, qi, 0)),        # x
            pl.BlockSpec((1, TQ, D), lambda b, qi: (b, qi, 0)),        # q
            pl.BlockSpec((1, S, 2 * D), lambda b, qi: (b, 0, 0)),      # k|v, whole seq
            pl.BlockSpec((1, 1, S), lambda b, qi: (b, 0, 0)),          # mask
            _full((D, D)),                                             # Wo
            _full((1, D)), _full((1, D)),                              # LN2
            _full((D, F)), _full((1, F)), _full((F, D)), _full((1, D)),  # FFN
        ],
        out_specs=pl.BlockSpec((1, TQ, D), lambda b, qi: (b, qi, 0)),
        compiler_params=pltpu.CompilerParams(
            dimension_semantics=("parallel", "parallel"),
            vmem_limit_bytes=vmem_limit),
        cost_estimate=pl.CostEstimate(
            flops=int(attn_flops),
            transcendentals=int(B * num_heads * S * S + 2 * B * S),
            bytes_accessed=int(attn_bytes)),
    )(x, q_bsd, kv_bsd, src_mask, wo,
      params["ln2_a"], params["ln2_b"],
      w1, params["b1"], w2, params["b2"])
    return out


# ---------------- pure-JAX reference (mirrors the PyTorch forward) ------------
def encoder_block_ref(x, src_mask, p, num_heads):
    B, S, D = x.shape
    d_k = D // num_heads

    def ln(t, a, b):
        mean = jnp.mean(t, axis=-1, keepdims=True)
        var = jnp.mean((t - mean) ** 2, axis=-1, keepdims=True)
        std = jnp.sqrt(var * (D / (D - 1.0)))
        return a * (t - mean) / (std + EPS) + b

    xn = ln(x, p["ln1_a"], p["ln1_b"])
    q = xn @ p["wq"]
    k = xn @ p["wk"]
    v = xn @ p["wv"]
    q = q.reshape(B, S, num_heads, d_k).transpose(0, 2, 1, 3)
    k = k.reshape(B, S, num_heads, d_k).transpose(0, 2, 1, 3)
    v = v.reshape(B, S, num_heads, d_k).transpose(0, 2, 1, 3)
    scores = jnp.einsum("bhqd,bhkd->bhqk", q, k) / jnp.sqrt(jnp.float32(d_k))
    mask4 = src_mask[:, None, :, :]                      # (B,1,1,S)
    scores = jnp.where(mask4 == 0, NEG_INF, scores)
    scores = jax.nn.softmax(scores, axis=-1)
    attn = jnp.einsum("bhqk,bhkd->bhqd", scores, v)
    attn = attn.transpose(0, 2, 1, 3).reshape(B, S, D) @ p["wo"]
    x1 = x + attn
    xn2 = ln(x1, p["ln2_a"], p["ln2_b"])
    ffn = jnp.maximum(xn2 @ p["w1"] + p["b1"], 0.0) @ p["w2"] + p["b2"]
    return x1 + ffn


if __name__ == "__main__":
    # Small but TPU-friendly shapes: lane-dense D=128, two q-tiles.
    B, S, D, H, F = 2, 512, 128, 4, 256

    key = jax.random.PRNGKey(0)
    ks = jax.random.split(key, 10)

    params = {
        "wq": jax.random.normal(ks[0], (D, D), jnp.float32) * 0.1,
        "wk": jax.random.normal(ks[1], (D, D), jnp.float32) * 0.1,
        "wv": jax.random.normal(ks[2], (D, D), jnp.float32) * 0.1,
        "wo": jax.random.normal(ks[3], (D, D), jnp.float32) * 0.1,
        "ln1_a": jnp.ones((1, D), jnp.float32),
        "ln1_b": jnp.zeros((1, D), jnp.float32),
        "w1": jax.random.normal(ks[4], (D, F), jnp.float32) * 0.1,
        "b1": jax.random.normal(ks[5], (1, F), jnp.float32) * 0.1,
        "w2": jax.random.normal(ks[6], (F, D), jnp.float32) * 0.1,
        "b2": jax.random.normal(ks[7], (1, D), jnp.float32) * 0.1,
        "ln2_a": jnp.ones((1, D), jnp.float32),
        "ln2_b": jnp.zeros((1, D), jnp.float32),
    }

    x = jax.random.normal(ks[8], (B, S, D), jnp.float32)
    # Padding-style source mask (1 = attend, 0 = masked), broadcast over queries.
    src_mask = jnp.ones((B, 1, S), jnp.int32)
    src_mask = src_mask.at[1, 0, -100:].set(0)   # batch 1: mask the last 100 keys
    src_mask = src_mask.at[0, 0, 3:19].set(0)    # batch 0: mask a few early keys

    out = jax.block_until_ready(encoder_block(x, src_mask, params, num_heads=H))
    ref = encoder_block_ref(x, src_mask, params, num_heads=H)

    assert out.shape == (B, S, D)
    assert not bool(jnp.any(jnp.isnan(out)))
    # bf16 matmul inputs with f32 accumulation -> compare with a scaled tolerance.
    max_err = float(jnp.max(jnp.abs(out - ref)))
    scale = float(jnp.max(jnp.abs(ref)))
    assert max_err <= 5e-2 * scale, f"max_err={max_err:.4e} scale={scale:.4e}"

    # TODO(synk): dropout is treated as eval-mode identity (p=0); training-mode
    # dropout would use pltpu.prng_seed / pltpu.prng_random_bits.
    print("KERNEL_OK")
</pallas_src>

<mosaic_0001>
module attributes {stable_mosaic.version = 11 : i64} {
  func.func @qkv_kernel(%arg0: i32, %arg1: i32, %arg2: memref<1x256x128xf32, #tpu.memory_space<vmem>>, %arg3: memref<1x128xf32, #tpu.memory_space<vmem>>, %arg4: memref<1x128xf32, #tpu.memory_space<vmem>>, %arg5: memref<128x384xbf16, #tpu.memory_space<vmem>>, %arg6: memref<1x256x128xbf16, #tpu.memory_space<vmem>>, %arg7: memref<1x256x256xbf16, #tpu.memory_space<vmem>>) attributes {dimension_semantics = [#tpu.dimension_semantics<parallel>, #tpu.dimension_semantics<parallel>], iteration_bounds = array<i64: 2, 2>, scalar_prefetch = 0 : i64, scratch_operands = 0 : i64, tpu.core_type = #tpu.core_type<tc>, window_params = [{transform_indices = @transform_0, window_bounds = array<i64: 1, 256, 128>}, {pipeline_mode = #tpu.pipeline_mode<synchronous>, transform_indices = @transform_1, window_bounds = array<i64: 1, 128>}, {pipeline_mode = #tpu.pipeline_mode<synchronous>, transform_indices = @transform_2, window_bounds = array<i64: 1, 128>}, {pipeline_mode = #tpu.pipeline_mode<synchronous>, transform_indices = @transform_3, window_bounds = array<i64: 128, 384>}, {transform_indices = @transform_4, window_bounds = array<i64: 1, 256, 128>}, {transform_indices = @transform_5, window_bounds = array<i64: 1, 256, 256>}]} {
    %c0 = arith.constant 0 : index
    %c0_0 = arith.constant 0 : index
    %c0_1 = arith.constant 0 : index
    %0 = vector.load %arg2[%c0, %c0_0, %c0_1] : memref<1x256x128xf32, #tpu.memory_space<vmem>>, vector<1x256x128xf32>
    %1 = vector.shape_cast %0 : vector<1x256x128xf32> to vector<256x128xf32>
    %c0_2 = arith.constant 0 : index
    %c0_3 = arith.constant 0 : index
    %2 = vector.load %arg3[%c0_2, %c0_3] : memref<1x128xf32, #tpu.memory_space<vmem>>, vector<1x128xf32>
    %c0_4 = arith.constant 0 : index
    %c0_5 = arith.constant 0 : index
    %3 = vector.load %arg4[%c0_4, %c0_5] : memref<1x128xf32, #tpu.memory_space<vmem>>, vector<1x128xf32>
    %cst = arith.constant dense<0.000000e+00> : vector<256xf32>
    %4 = vector.multi_reduction <add>, %1, %cst [1] : vector<256x128xf32> to vector<256xf32>
    %5 = vector.shape_cast %4 : vector<256xf32> to vector<256x1xf32>
    %cst_6 = arith.constant 1.280000e+02 : f32
    %6 = vector.broadcast %cst_6 : f32 to vector<256x1xf32>
    %7 = arith.divf %5, %6 : vector<256x1xf32>
    %8 = vector.broadcast %7 : vector<256x1xf32> to vector<256x128xf32>
    %9 = arith.subf %1, %8 : vector<256x128xf32>
    %10 = arith.mulf %9, %9 : vector<256x128xf32>
    %cst_7 = arith.constant dense<0.000000e+00> : vector<256xf32>
    %11 = vector.multi_reduction <add>, %10, %cst_7 [1] : vector<256x128xf32> to vector<256xf32>
    %12 = vector.shape_cast %11 : vector<256xf32> to vector<256x1xf32>
    %cst_8 = arith.constant 1.280000e+02 : f32
    %13 = vector.broadcast %cst_8 : f32 to vector<256x1xf32>
    %14 = arith.divf %12, %13 : vector<256x1xf32>
    %cst_9 = arith.constant 1.00787401 : f32
    %15 = vector.broadcast %cst_9 : f32 to vector<256x1xf32>
    %16 = arith.mulf %14, %15 : vector<256x1xf32>
    %17 = math.sqrt %16 : vector<256x1xf32>
    %18 = vector.broadcast %7 : vector<256x1xf32> to vector<256x128xf32>
    %19 = arith.subf %1, %18 : vector<256x128xf32>
    %cst_10 = arith.constant 9.99999997E-7 : f32
    %20 = vector.broadcast %cst_10 : f32 to vector<256x1xf32>
    %21 = arith.addf %17, %20 : vector<256x1xf32>
    %22 = vector.broadcast %21 : vector<256x1xf32> to vector<256x128xf32>
    %23 = arith.divf %19, %22 : vector<256x128xf32>
    %24 = vector.broadcast %2 : vector<1x128xf32> to vector<256x128xf32>
    %25 = arith.mulf %23, %24 : vector<256x128xf32>
    %26 = vector.broadcast %3 : vector<1x128xf32> to vector<256x128xf32>
    %27 = arith.addf %25, %26 : vector<256x128xf32>
    %28 = arith.truncf %27 : vector<256x128xf32> to vector<256x128xbf16>
    %c0_11 = arith.constant 0 : index
    %c0_12 = arith.constant 0 : index
    %29 = vector.load %arg5[%c0_11, %c0_12] : memref<128x384xbf16, #tpu.memory_space<vmem>>, vector<128x384xbf16>
    %cst_13 = arith.constant dense<0.000000e+00> : vector<256x384xf32>
    %30 = tpu.matmul %28, %29, %cst_13 {dimension_numbers = #tpu.dot_dimension_numbers<[1], [0], [0], [1], [0, 0, 1, 1], [], []>} : vector<256x128xbf16>, vector<128x384xbf16>, vector<256x384xf32> -> vector<256x384xf32>
    %31 = arith.truncf %30 : vector<256x384xf32> to vector<256x384xbf16>
    %32 = vector.extract_strided_slice %31 {offsets = [0, 0], sizes = [256, 128], strides = [1, 1]} : vector<256x384xbf16> to vector<256x128xbf16>
    %c0_14 = arith.constant 0 : index
    %c0_15 = arith.constant 0 : index
    %c0_16 = arith.constant 0 : index
    %33 = vector.load %arg6[%c0_14, %c0_15, %c0_16] : memref<1x256x128xbf16, #tpu.memory_space<vmem>>, vector<1x256x128xbf16>
    %34 = vector.shape_cast %33 : vector<1x256x128xbf16> to vector<256x128xbf16>
    %35 = vector.shape_cast %32 : vector<256x128xbf16> to vector<1x256x128xbf16>
    tpu.vector_store %arg6[%c0_14, %c0_15, %c0_16], %35 {strides = array<i32>} : memref<1x256x128xbf16, #tpu.memory_space<vmem>>, vector<1x256x128xbf16>,
    %36 = vector.extract_strided_slice %31 {offsets = [0, 128], sizes = [256, 256], strides = [1, 1]} : vector<256x384xbf16> to vector<256x256xbf16>
    %c0_17 = arith.constant 0 : index
    %c0_18 = arith.constant 0 : index
    %c0_19 = arith.constant 0 : index
    %37 = vector.load %arg7[%c0_17, %c0_18, %c0_19] : memref<1x256x256xbf16, #tpu.memory_space<vmem>>, vector<1x256x256xbf16>
    %38 = vector.shape_cast %37 : vector<1x256x256xbf16> to vector<256x256xbf16>
    %39 = vector.shape_cast %36 : vector<256x256xbf16> to vector<1x256x256xbf16>
    tpu.vector_store %arg7[%c0_17, %c0_18, %c0_19], %39 {strides = array<i32>} : memref<1x256x256xbf16, #tpu.memory_space<vmem>>, vector<1x256x256xbf16>,
    return
  }
  func.func @transform_0(%arg0: i32, %arg1: i32) -> (i32, i32, i32) {
    %c0_i32 = arith.constant 0 : i32
    %c0_i32_0 = arith.constant 0 : i32
    return %arg0, %arg1, %c0_i32 : i32, i32, i32
  }
  func.func @transform_1(%arg0: i32, %arg1: i32) -> (i32, i32) {
    %c0_i32 = arith.constant 0 : i32
    %c0_i32_0 = arith.constant 0 : i32
    %c0_i32_1 = arith.constant 0 : i32
    return %c0_i32, %c0_i32_0 : i32, i32
  }
  func.func @transform_2(%arg0: i32, %arg1: i32) -> (i32, i32) {
    %c0_i32 = arith.constant 0 : i32
    %c0_i32_0 = arith.constant 0 : i32
    %c0_i32_1 = arith.constant 0 : i32
    return %c0_i32, %c0_i32_0 : i32, i32
  }
  func.func @transform_3(%arg0: i32, %arg1: i32) -> (i32, i32) {
    %c0_i32 = arith.constant 0 : i32
    %c0_i32_0 = arith.constant 0 : i32
    %c0_i32_1 = arith.constant 0 : i32
    return %c0_i32, %c0_i32_0 : i32, i32
  }
  func.func @transform_4(%arg0: i32, %arg1: i32) -> (i32, i32, i32) {
    %c0_i32 = arith.constant 0 : i32
    %c0_i32_0 = arith.constant 0 : i32
    return %arg0, %arg1, %c0_i32 : i32, i32, i32
  }
  func.func @transform_5(%arg0: i32, %arg1: i32) -> (i32, i32, i32) {
    %c0_i32 = arith.constant 0 : i32
    %c0_i32_0 = arith.constant 0 : i32
    return %arg0, %arg1, %c0_i32 : i32, i32, i32
  }
}

</mosaic_0001>

<llo_original>
// kernel: tpu_custom_call.1
$region0: #{tpu_custom_call.1}
  #allocation0 [shape = 'u32[]', space=smem, size = 0x4, offset = 0x4, fixed_abs, tag = 'smem constant byte address 0x4 - core index']
  #allocation1 [shape = 'u32[72,128]{1,0:T(1,128)}', space=vmem, size = 0x9000, scoped, tag = 'internal scratch']
  %s0 = inlined_call_operand.hbm [shape: f32[2,512,128], index: 0, kind: input, shape index: {}]
  %s1 = inlined_call_operand.hbm [shape: f32[1,128], index: 1, kind: input, shape index: {}]
  %s2 = inlined_call_operand.vmem [shape: f32[1,128], index: 2, kind: input, shape index: {}]
  %s3 = inlined_call_operand.hbm [shape: bf16[128,384], index: 3, kind: input, shape index: {}]
  %s4 = inlined_call_operand.hbm [shape: bf16[2,512,128], index: 4, kind: output, shape index: {0}]
  %s5 = inlined_call_operand.hbm [shape: bf16[2,512,256], index: 5, kind: output, shape index: {1}]
  %6 = xla_tuple %s4, %s5
  %s7 = sld [smem:[#allocation0]]
  $region69: #{tpu_custom_call.1} parent=0
    _
  %s9 = ssub.s32 1, %s7
  %s10 = scalar_select 0, %s9, %s7
  $region1: #{tpu_custom_call.1} parent=0
    #allocation2 [shape = 'u8[262144]{0}', space=vmem, size = 0x40000, scoped, tag = 'input window, operand 0']
    #allocation3 [shape = 's32[2]{0}', space=sflag, size = 0x8, scoped, tag = 'scoped memory for tpu_custom_call.1']
    #allocation4 [shape = 's32[2]{0}', space=sflag, size = 0x8, scoped, tag = 'scoped memory for tpu_custom_call.1']
    #allocation5 [shape = 'u8[512]{0}', space=vmem, size = 0x400, scoped, tag = 'input window, operand 1, single buffered']
    #allocation6 [shape = 's32[1]{0}', space=sflag, size = 0x4, scoped, tag = 'scoped memory for tpu_custom_call.1']
    #allocation7 [shape = 'u8[98304]{0}', space=vmem, size = 0x18000, scoped, tag = 'input window, operand 3, single buffered']
    #allocation8 [shape = 'u8[131072]{0}', space=vmem, size = 0x20000, scoped, tag = 'output window, operand 0']
    #allocation9 [shape = 'u8[262144]{0}', space=vmem, size = 0x40000, scoped, tag = 'output window, operand 1']
    #allocation10 [shape = 's32[2]{0}', space=sflag, size = 0x8, scoped, tag = 'scoped memory for tpu_custom_call.1']
    %11 = vsyncpa [#allocation3], 0
    %s12 = scalar_lea.sflag [#allocation3], 1
    %13 = vsyncpa %s12, 0
    %14 = vsyncpa [#allocation6], 0
    %15 = vsyncpa [#allocation4], 0
    %s16 = scalar_lea.sflag [#allocation4], 1
    %17 = vsyncpa %s16, 0
    %18 = vsyncpa [#allocation10], 0
    %s19 = scalar_lea.sflag [#allocation10], 1
    %20 = vsyncpa %s19, 0
    loop: start=0, step=1, limit=6
    $region2: #{tpu_custom_call.1} parent=1 // loop_pre_header
      _
    $region3: #{tpu_custom_call.1} parent=1 // loop_header
      %s22 = sphi 0, %s26
      %p23 = scmp.ge.s32.totalorder %s22, 6
      %s29 = sphi 0, %s41
      %s30 = sphi 0, %s37
      %s31 = sphi 0, %s29
      %s32 = sphi 0, %s30
      %s33 = sphi 0, %s31
      %s34 = sphi 0, %s32
      %s46 = sphi 0, %s48
      %s49 = sphi 0, %s46
      %s50 = sphi 0, %s49
      %s66 = sphi 0, %s50
      %s70 = sphi 0, %s70
      %s72 = sphi 0, %s70
      %s73 = sphi 0, %s72
      %s87 = sphi 0, %s73
      %s91 = sphi 0, %s91
      %s93 = sphi 0, %s91
      %s94 = sphi 0, %s93
      %s108 = sphi 0, %s94
      %s112 = sphi 0, %s112
      %s114 = sphi 0, %s112
      %s115 = sphi 0, %s114
      %s129 = sphi 0, %s115
      %s137 = sphi 0, %s139
      %s140 = sphi 0, %s137
      %s141 = sphi 0, %s140
      %s157 = sphi 0, %s141
      %s165 = sphi 0, %s167
      %s168 = sphi 0, %s165
      %s169 = sphi 0, %s168
      %s185 = sphi 0, %s169
    $region4: #{tpu_custom_call.1} parent=1 // loop_header_branch
      %25 = sbr.rel (%p23) target = $region8
    $region5: #{tpu_custom_call.1} parent=1 // loop_body
      %s27 = ssub.s32 %s22, 1
      %s28 = ssub.s32 %s22, 2
      %s35 = sadd.s32 1, %s30
      %p36 = scmp.ge.s32.totalorder %s35, 2
      %s37 = scalar_select %p36, 0, %s35
      %s38 = sadd.s32 1, %s29
      %s39 = scalar_select %p36, %s38, %s29
      %p40 = scmp.ge.s32.totalorder %s39, 2
      %s41 = scalar_select %p40, 0, %s39
      %s42 = ssub.s32 %s29, %s41
      %s43 = ssub.s32 %s30, %s37
      %s44 = sor.u32 %s42, %s43
      %p45 = scmp.eq.s32.totalorder %s44, 0
      %s47 = sadd.s32 %s46, 1
      %s48 = scalar_select %p45, %s46, %s47
      %p51 = pneg %p45
      %p52 = scmp.eq.s32.totalorder %s22, 3
      %p53 = por %p51, %p52
      %p54 = scmp.ne.s32.totalorder %s46, %s49
      %p55 = scmp.eq.s32.totalorder %s22, 0
      %p56 = por %p54, %p55
      %p57 = scmp.ne.s32.totalorder %s46, %s49
      %p58 = scmp.eq.s32.totalorder %s27, 3
      %p59 = por %p57, %p58
      %p60 = scmp.ne.s32.totalorder %s49, %s50
      %p61 = scmp.eq.s32.totalorder %s27, 0
      %p62 = por %p60, %p61
      %p63 = scmp.ne.s32.totalorder %s49, %s50
      %p64 = scmp.eq.s32.totalorder %s28, 3
      %p65 = por %p63, %p64
      %p67 = scmp.ne.s32.totalorder %s50, %s66
      %p68 = scmp.eq.s32.totalorder %s28, 0
      %p69 = por %p67, %p68
      %s71 = sadd.s32 %s70, 1
      %p74 = scmp.eq.s32.totalorder %s22, 3
      %p75 = scmp.ne.s32.totalorder %s70, %s72
      %p76 = scmp.eq.s32.totalorder %s22, 0
      %p77 = por %p75, %p76
      %p78 = scmp.ne.s32.totalorder %s70, %s72
      %p79 = scmp.eq.s32.totalorder %s27, 3
      %p80 = por %p78, %p79
      %p81 = scmp.ne.s32.totalorder %s72, %s73
      %p82 = scmp.eq.s32.totalorder %s27, 0
      %p83 = por %p81, %p82
      %p84 = scmp.ne.s32.totalorder %s72, %s73
      %p85 = scmp.eq.s32.totalorder %s28, 3
      %p86 = por %p84, %p85
      %p88 = scmp.ne.s32.totalorder %s73, %s87
      %p89 = scmp.eq.s32.totalorder %s28, 0
      %p90 = por %p88, %p89
      %s92 = sadd.s32 %s91, 1
      %p95 = scmp.eq.s32.totalorder %s22, 3
      %p96 = scmp.ne.s32.totalorder %s91, %s93
      %p97 = scmp.eq.s32.totalorder %s22, 0
      %p98 = por %p96, %p97
      %p99 = scmp.ne.s32.totalorder %s91, %s93
      %p100 = scmp.eq.s32.totalorder %s27, 3
      %p101 = por %p99, %p100
      %p102 = scmp.ne.s32.totalorder %s93, %s94
      %p103 = scmp.eq.s32.totalorder %s27, 0
      %p104 = por %p102, %p103
      %p105 = scmp.ne.s32.totalorder %s93, %s94
      %p106 = scmp.eq.s32.totalorder %s28, 3
      %p107 = por %p105, %p106
      %p109 = scmp.ne.s32.totalorder %s94, %s108
      %p110 = scmp.eq.s32.totalorder %s28, 0
      %p111 = por %p109, %p110
      %s113 = sadd.s32 %s112, 1
      %p116 = scmp.eq.s32.totalorder %s22, 3
      %p117 = scmp.ne.s32.totalorder %s112, %s114
      %p118 = scmp.eq.s32.totalorder %s22, 0
      %p119 = por %p117, %p118
      %p120 = scmp.ne.s32.totalorder %s112, %s114
      %p121 = scmp.eq.s32.totalorder %s27, 3
      %p122 = por %p120, %p121
      %p123 = scmp.ne.s32.totalorder %s114, %s115
      %p124 = scmp.eq.s32.totalorder %s27, 0
      %p125 = por %p123, %p124
      %p126 = scmp.ne.s32.totalorder %s114, %s115
      %p127 = scmp.eq.s32.totalorder %s28, 3
      %p128 = por %p126, %p127
      %p130 = scmp.ne.s32.totalorder %s115, %s129
      %p131 = scmp.eq.s32.totalorder %s28, 0
      %p132 = por %p130, %p131
      %s133 = ssub.s32 %s29, %s41
      %s134 = ssub.s32 %s30, %s37
      %s135 = sor.u32 %s133, %s134
      %p136 = scmp.eq.s32.totalorder %s135, 0
      %s138 = sadd.s32 %s137, 1
      %s139 = scalar_select %p136, %s137, %s138
      %p142 = pneg %p136
      %p143 = scmp.eq.s32.totalorder %s22, 3
      %p144 = por %p142, %p143
      %p145 = scmp.ne.s32.totalorder %s137, %s140
      %p146 = scmp.eq.s32.totalorder %s22, 0
      %p147 = por %p145, %p146
      %p148 = scmp.ne.s32.totalorder %s137, %s140
      %p149 = scmp.eq.s32.totalorder %s27, 3
      %p150 = por %p148, %p149
      %p151 = scmp.ne.s32.totalorder %s140, %s141
      %p152 = scmp.eq.s32.totalorder %s27, 0
      %p153 = por %p151, %p152
      %p154 = scmp.ne.s32.totalorder %s140, %s141
      %p155 = scmp.eq.s32.totalorder %s28, 3
      %p156 = por %p154, %p155
      %p158 = scmp.ne.s32.totalorder %s141, %s157
      %p159 = scmp.eq.s32.totalorder %s28, 0
      %p160 = por %p158, %p159
      %s161 = ssub.s32 %s29, %s41
      %s162 = ssub.s32 %s30, %s37
      %s163 = sor.u32 %s161, %s162
      %p164 = scmp.eq.s32.totalorder %s163, 0
      %s166 = sadd.s32 %s165, 1
      %s167 = scalar_select %p164, %s165, %s166
      %p170 = pneg %p164
      %p171 = scmp.eq.s32.totalorder %s22, 3
      %p172 = por %p170, %p171
      %p173 = scmp.ne.s32.totalorder %s165, %s168
      %p174 = scmp.eq.s32.totalorder %s22, 0
      %p175 = por %p173, %p174
      %p176 = scmp.ne.s32.totalorder %s165, %s168
      %p177 = scmp.eq.s32.totalorder %s27, 3
      %p178 = por %p176, %p177
      %p179 = scmp.ne.s32.totalorder %s168, %s169
      %p180 = scmp.eq.s32.totalorder %s27, 0
      %p181 = por %p179, %p180
      %p182 = scmp.ne.s32.totalorder %s168, %s169
      %p183 = scmp.eq.s32.totalorder %s28, 3
      %p184 = por %p182, %p183
      %p186 = scmp.ne.s32.totalorder %s169, %s185
      %p187 = scmp.eq.s32.totalorder %s28, 0
      %p188 = por %p186, %p187
      %p189 = scmp.le.s32.totalorder 1, %s22
      %p190 = scmp.lt.s32.totalorder %s22, 5
      %p191 = pnand %p189, %p190
      %p192 = pneg %p191
      // Predicated region
      $region9: #{tpu_custom_call.1} parent=5 // pred_check
        _
      $region10: #{tpu_custom_call.1} parent=5 // pred_check_branch
        %194 = sbr.rel (%p191) target = $region12
      $region11: #{tpu_custom_call.1} parent=5 // pred_region
        %s195 = ssub.s32 %s22, 1
        // Predicated region
        $region13: #{tpu_custom_call.1} parent=11 // pred_check
          %p196 = pneg %p83
        $region14: #{tpu_custom_call.1} parent=11 // pred_check_branch
          %198 = sbr.rel (%p196) target = $region16
        $region15: #{tpu_custom_call.1} parent=11 // pred_region
          %200 = vsyncadd [#allocation6], 0
          %s202 = sshll.u32 %s1, 4
          %s203 = int_to_ptr.hbm [resolvable:$true] %s202
          %s204 = sshll.u32 [#allocation5], 4
          %s205 = int_to_ptr.vmem [resolvable:$true] %s204
          %207 = dma.hbm_to_vmem [thread:$0]  %s203, 16, %s205, [#allocation6]
        $region16: #{tpu_custom_call.1} parent=11 // pred_fallthru
          _
        // Predicated region
        $region17: #{tpu_custom_call.1} parent=11 // pred_check
          %p208 = pneg %p104
        $region18: #{tpu_custom_call.1} parent=11 // pred_check_branch
          %210 = sbr.rel (%p208) target = $region20
        $region19: #{tpu_custom_call.1} parent=11 // pred_region
          _
        $region20: #{tpu_custom_call.1} parent=11 // pred_fallthru
          _
        // Predicated region
        $region21: #{tpu_custom_call.1} parent=11 // pred_check
          %p211 = pneg %p125
        $region22: #{tpu_custom_call.1} parent=11 // pred_check_branch
          %213 = sbr.rel (%p211) target = $region24
        $region23: #{tpu_custom_call.1} parent=11 // pred_region
          %215 = vsyncadd [#allocation6], 0
          %s216 = sshll.u32 %s3, 4
          %s217 = int_to_ptr.hbm [resolvable:$true] %s216
          %s218 = sshll.u32 [#allocation7], 4
          %s219 = int_to_ptr.vmem [resolvable:$true] %s218
          %224 = dma.hbm_to_vmem [thread:$0]  %s217, 3072, %s219, [#allocation6], 192, 192, 12
        $region24: #{tpu_custom_call.1} parent=11 // pred_fallthru
          _
      $region12: #{tpu_custom_call.1} parent=5 // pred_fallthru
        _
      %p225 = scmp.lt.s32.totalorder %s22, 4
      // Predicated region
      $region25: #{tpu_custom_call.1} parent=5 // pred_check
        %p226 = pneg %p225
      $region26: #{tpu_custom_call.1} parent=5 // pred_check_branch
        %228 = sbr.rel (%p226) target = $region28
      $region27: #{tpu_custom_call.1} parent=5 // pred_region
        // Predicated region
        $region29: #{tpu_custom_call.1} parent=27 // pred_check
          %p229 = pneg %p56
        $region30: #{tpu_custom_call.1} parent=27 // pred_check_branch
          %231 = sbr.rel (%p229) target = $region32
        $region31: #{tpu_custom_call.1} parent=27 // pred_region
          %s232 = sand.u32 %s46, 1
          %s233 = scalar_lea.sflag [#allocation3], %s232
          %s234 = sand.u32 %s46, 1
          %s235 = smul.addr %s234, 256
          %s236 = scalar_lea.vmem [#allocation2], %s235
          %s237 = smul.u32 32, %s30
          %239 = vsyncadd %s233, 0
          %s240 = smul.addr %s29, 64
          %s241 = sadd.s32 %s237, %s240
          %s242 = smul.addr %s241, 8
          %s243 = scalar_lea.hbm %s0, %s242
          %s244 = sshll.u32 %s243, 4
          %s245 = int_to_ptr.hbm [resolvable:$true] %s244
          %s246 = sshll.u32 %s236, 4
          %s247 = int_to_ptr.vmem [resolvable:$true] %s246
          %252 = dma.hbm_to_vmem [thread:$0]  %s245, 4096, %s247, %s233, 128, 128, 8
        $region32: #{tpu_custom_call.1} parent=27 // pred_fallthru
          _
      $region28: #{tpu_custom_call.1} parent=5 // pred_fallthru
        _
      %p253 = scmp.le.s32.totalorder 1, %s22
      %p254 = scmp.lt.s32.totalorder %s22, 5
      %p255 = pnand %p253, %p254
      %p256 = pneg %p255
      // Predicated region
      $region33: #{tpu_custom_call.1} parent=5 // pred_check
        _
      $region34: #{tpu_custom_call.1} parent=5 // pred_check_branch
        %258 = sbr.rel (%p255) target = $region36
      $region35: #{tpu_custom_call.1} parent=5 // pred_region
        %s259 = ssub.s32 %s22, 1
        %s260 = sand.u32 %s49, 1
        %s261 = scalar_lea.sflag [#allocation3], %s260
        %s262 = sand.u32 %s49, 1
        %s263 = smul.addr %s262, 256
        %s264 = scalar_lea.vmem [#allocation2], %s263
        // Predicated region
        $region37: #{tpu_custom_call.1} parent=35 // pred_check
          %p265 = pneg %p62
        $region38: #{tpu_custom_call.1} parent=35 // pred_check_branch
          %267 = sbr.rel (%p265) target = $region40
        $region39: #{tpu_custom_call.1} parent=35 // pred_region
          %269 = dma.done %s261, 4096
        $region40: #{tpu_custom_call.1} parent=35 // pred_fallthru
          _
        // Predicated region
        $region41: #{tpu_custom_call.1} parent=35 // pred_check
          %p270 = pneg %p83
        $region42: #{tpu_custom_call.1} parent=35 // pred_check_branch
          %272 = sbr.rel (%p270) target = $region44
        $region43: #{tpu_custom_call.1} parent=35 // pred_region
          %274 = dma.done [#allocation6], 16
        $region44: #{tpu_custom_call.1} parent=35 // pred_fallthru
          _
        // Predicated region
        $region45: #{tpu_custom_call.1} parent=35 // pred_check
          %p275 = pneg %p125
        $region46: #{tpu_custom_call.1} parent=35 // pred_check_branch
          %277 = sbr.rel (%p275) target = $region48
        $region47: #{tpu_custom_call.1} parent=35 // pred_region
          %279 = dma.done [#allocation6], 3072
        $region48: #{tpu_custom_call.1} parent=35 // pred_fallthru
          _
        %s280 = sand.u32 %s49, 1
        %s281 = scalar_lea.sflag [#allocation3], %s280
        %s282 = sand.u32 %s49, 1
        %s283 = smul.addr %s282, 256
        %s284 = scalar_lea.vmem [#allocation2], %s283
        %p285 = pneg %p62
        %p286 = pneg %p59
        %p287 = pneg %p83
        %p288 = pneg %p80
        %p289 = pneg %p104
        %p290 = pneg %p101
        %p291 = pneg %p125
        %p292 = pneg %p122
        %p293 = pneg %p153
        %p294 = pneg %p150
        %s295 = sand.u32 %s140, 1
        %s296 = scalar_lea.sflag [#allocation4], %s295
        %s297 = sand.u32 %s140, 1
        %s298 = smul.addr %s297, 128
        %s299 = scalar_lea.vmem [#allocation8], %s298
        %p300 = pneg %p181
        %p301 = pneg %p178
        %s302 = sand.u32 %s168, 1
        %s303 = scalar_lea.sflag [#allocation10], %s302
        %s304 = sand.u32 %s168, 1
        %s305 = smul.addr %s304, 256
        %s306 = scalar_lea.vmem [#allocation9], %s305
        %s307 = smul.u32 32, %s32
        %s308 = smul.u32 32, %s32
        %s309 = smul.u32 32, %s32
        %v310 = vld [vmem:[%s264] sm:$0xff]
        %v311 = vld [vmem:[%s264 + $0x8] sm:$0xff]
        %v312 = vld [vmem:[%s264 + $0x10] sm:$0xff]
        %v313 = vld [vmem:[%s264 + $0x18] sm:$0xff]
        %v314 = vld [vmem:[%s264 + $0x20] sm:$0xff]
        %v315 = vld [vmem:[%s264 + $0x28] sm:$0xff]
        %v316 = vld [vmem:[%s264 + $0x30] sm:$0xff]
        %v317 = vld [vmem:[%s264 + $0x38] sm:$0xff]
        %v318 = vld [vmem:[%s264 + $0x40] sm:$0xff]
        %v319 = vld [vmem:[%s264 + $0x48] sm:$0xff]
        %v320 = vld [vmem:[%s264 + $0x50] sm:$0xff]
        %v321 = vld [vmem:[%s264 + $0x58] sm:$0xff]
        %v322 = vld [vmem:[%s264 + $0x60] sm:$0xff]
        %v323 = vld [vmem:[%s264 + $0x68] sm:$0xff]
        %v324 = vld [vmem:[%s264 + $0x70] sm:$0xff]
        %v325 = vld [vmem:[%s264 + $0x78] sm:$0xff]
        %v326 = vld [vmem:[%s264 + $0x80] sm:$0xff]
        %v327 = vld [vmem:[%s264 + $0x88] sm:$0xff]
        %v328 = vld [vmem:[%s264 + $0x90] sm:$0xff]
        %v329 = vld [vmem:[%s264 + $0x98] sm:$0xff]
        %v330 = vld [vmem:[%s264 + $0xa0] sm:$0xff]
        %v331 = vld [vmem:[%s264 + $0xa8] sm:$0xff]
        %v332 = vld [vmem:[%s264 + $0xb0] sm:$0xff]
        %v333 = vld [vmem:[%s264 + $0xb8] sm:$0xff]
        %v334 = vld [vmem:[%s264 + $0xc0] sm:$0xff]
        %v335 = vld [vmem:[%s264 + $0xc8] sm:$0xff]
        %v336 = vld [vmem:[%s264 + $0xd0] sm:$0xff]
        %v337 = vld [vmem:[%s264 + $0xd8] sm:$0xff]
        %v338 = vld [vmem:[%s264 + $0xe0] sm:$0xff]
        %v339 = vld [vmem:[%s264 + $0xe8] sm:$0xff]
        %v340 = vld [vmem:[%s264 + $0xf0] sm:$0xff]
        %v341 = vld [vmem:[%s264 + $0xf8] sm:$0xff]
        %v342 = vld [vmem:[#allocation5] sm:$0x1]
        %v343 = vld [vmem:[%s2] sm:$0x1]
        %344 = vadd.xlane.f32.xlu0 %v310
        %v345 = vpop.xlane.xlu0 %344
        %346 = vadd.xlane.f32.xlu0 %v311
        %v347 = vpop.xlane.xlu0 %346
        %348 = vadd.xlane.f32.xlu0 %v312
        %v349 = vpop.xlane.xlu0 %348
        %350 = vadd.xlane.f32.xlu0 %v313
        %v351 = vpop.xlane.xlu0 %350
        %352 = vadd.xlane.f32.xlu0 %v314
        %v353 = vpop.xlane.xlu0 %352
        %354 = vadd.xlane.f32.xlu0 %v315
        %v355 = vpop.xlane.xlu0 %354
        %356 = vadd.xlane.f32.xlu0 %v316
        %v357 = vpop.xlane.xlu0 %356
        %358 = vadd.xlane.f32.xlu0 %v317
        %v359 = vpop.xlane.xlu0 %358
        %360 = vadd.xlane.f32.xlu0 %v318
        %v361 = vpop.xlane.xlu0 %360
        %362 = vadd.xlane.f32.xlu0 %v319
        %v363 = vpop.xlane.xlu0 %362
        %364 = vadd.xlane.f32.xlu0 %v320
        %v365 = vpop.xlane.xlu0 %364
        %366 = vadd.xlane.f32.xlu0 %v321
        %v367 = vpop.xlane.xlu0 %366
        %368 = vadd.xlane.f32.xlu0 %v322
        %v369 = vpop.xlane.xlu0 %368
        %370 = vadd.xlane.f32.xlu0 %v323
        %v371 = vpop.xlane.xlu0 %370
        %372 = vadd.xlane.f32.xlu0 %v324
        %v373 = vpop.xlane.xlu0 %372
        %374 = vadd.xlane.f32.xlu0 %v325
        %v375 = vpop.xlane.xlu0 %374
        %376 = vadd.xlane.f32.xlu0 %v326
        %v377 = vpop.xlane.xlu0 %376
        %378 = vadd.xlane.f32.xlu0 %v327
        %v379 = vpop.xlane.xlu0 %378
        %380 = vadd.xlane.f32.xlu0 %v328
        %v381 = vpop.xlane.xlu0 %380
        %382 = vadd.xlane.f32.xlu0 %v329
        %v383 = vpop.xlane.xlu0 %382
        %384 = vadd.xlane.f32.xlu0 %v330
        %v385 = vpop.xlane.xlu0 %384
        %386 = vadd.xlane.f32.xlu0 %v331
        %v387 = vpop.xlane.xlu0 %386
        %388 = vadd.xlane.f32.xlu0 %v332
        %v389 = vpop.xlane.xlu0 %388
        %390 = vadd.xlane.f32.xlu0 %v333
        %v391 = vpop.xlane.xlu0 %390
        %392 = vadd.xlane.f32.xlu0 %v334
        %v393 = vpop.xlane.xlu0 %392
        %394 = vadd.xlane.f32.xlu0 %v335
        %v395 = vpop.xlane.xlu0 %394
        %396 = vadd.xlane.f32.xlu0 %v336
        %v397 = vpop.xlane.xlu0 %396
        %398 = vadd.xlane.f32.xlu0 %v337
        %v399 = vpop.xlane.xlu0 %398
        %400 = vadd.xlane.f32.xlu0 %v338
        %v401 = vpop.xlane.xlu0 %400
        %402 = vadd.xlane.f32.xlu0 %v339
        %v403 = vpop.xlane.xlu0 %402
        %404 = vadd.xlane.f32.xlu0 %v340
        %v405 = vpop.xlane.xlu0 %404
        %406 = vadd.xlane.f32.xlu0 %v341
        %v407 = vpop.xlane.xlu0 %406
        %v408 = vrcp.pop 128.0
        %v409 = vmul.f32 128.0, %v408
        %v410 = vsub.f32 1.0, %v409
        %v411 = vmul.f32 %v408, %v410
        %v412 = vadd.f32 %v408, %v411
        %vm413 = vweird.f32 %v408
        %v414 = vsel %vm413, %v408, %v412
        %v415 = vmul.f32 %v345, %v414
        %v416 = vmul.f32 %v347, %v414
        %v417 = vmul.f32 %v349, %v414
        %v418 = vmul.f32 %v351, %v414
        %v419 = vmul.f32 %v353, %v414
        %v420 = vmul.f32 %v355, %v414
        %v421 = vmul.f32 %v357, %v414
        %v422 = vmul.f32 %v359, %v414
        %v423 = vmul.f32 %v361, %v414
        %v424 = vmul.f32 %v363, %v414
        %v425 = vmul.f32 %v365, %v414
        %v426 = vmul.f32 %v367, %v414
        %v427 = vmul.f32 %v369, %v414
        %v428 = vmul.f32 %v371, %v414
        %v429 = vmul.f32 %v373, %v414
        %v430 = vmul.f32 %v375, %v414
        %v431 = vmul.f32 %v377, %v414
        %v432 = vmul.f32 %v379, %v414
        %v433 = vmul.f32 %v381, %v414
        %v434 = vmul.f32 %v383, %v414
        %v435 = vmul.f32 %v385, %v414
        %v436 = vmul.f32 %v387, %v414
        %v437 = vmul.f32 %v389, %v414
        %v438 = vmul.f32 %v391, %v414
        %v439 = vmul.f32 %v393, %v414
        %v440 = vmul.f32 %v395, %v414
        %v441 = vmul.f32 %v397, %v414
        %v442 = vmul.f32 %v399, %v414
        %v443 = vmul.f32 %v401, %v414
        %v444 = vmul.f32 %v403, %v414
        %v445 = vmul.f32 %v405, %v414
        %v446 = vmul.f32 %v407, %v414
        %v447 = vsub.f32 %v310, %v415
        %v448 = vsub.f32 %v311, %v416
        %v449 = vsub.f32 %v312, %v417
        %v450 = vsub.f32 %v313, %v418
        %v451 = vsub.f32 %v314, %v419
        %v452 = vsub.f32 %v315, %v420
        %v453 = vsub.f32 %v316, %v421
        %v454 = vsub.f32 %v317, %v422
        %v455 = vsub.f32 %v318, %v423
        %v456 = vsub.f32 %v319, %v424
        %v457 = vsub.f32 %v320, %v425
        %v458 = vsub.f32 %v321, %v426
        %v459 = vsub.f32 %v322, %v427
        %v460 = vsub.f32 %v323, %v428
        %v461 = vsub.f32 %v324, %v429
        %v462 = vsub.f32 %v325, %v430
        %v463 = vsub.f32 %v326, %v431
        %v464 = vsub.f32 %v327, %v432
        %v465 = vsub.f32 %v328, %v433
        %v466 = vsub.f32 %v329, %v434
        %v467 = vsub.f32 %v330, %v435
        %v468 = vsub.f32 %v331, %v436
        %v469 = vsub.f32 %v332, %v437
        %v470 = vsub.f32 %v333, %v438
        %v471 = vsub.f32 %v334, %v439
        %v472 = vsub.f32 %v335, %v440
        %v473 = vsub.f32 %v336, %v441
        %v474 = vsub.f32 %v337, %v442
        %v475 = vsub.f32 %v338, %v443
        %v476 = vsub.f32 %v339, %v444
        %v477 = vsub.f32 %v340, %v445
        %v478 = vsub.f32 %v341, %v446
        %v479 = vmul.f32 %v447, %v447
        %v480 = vmul.f32 %v448, %v448
        %v481 = vmul.f32 %v449, %v449
        %v482 = vmul.f32 %v450, %v450
        %v483 = vmul.f32 %v451, %v451
        %v484 = vmul.f32 %v452, %v452
        %v485 = vmul.f32 %v453, %v453
        %v486 = vmul.f32 %v454, %v454
        %v487 = vmul.f32 %v455, %v455
        %v488 = vmul.f32 %v456, %v456
        %v489 = vmul.f32 %v457, %v457
        %v490 = vmul.f32 %v458, %v458
        %v491 = vmul.f32 %v459, %v459
        %v492 = vmul.f32 %v460, %v460
        %v493 = vmul.f32 %v461, %v461
        %v494 = vmul.f32 %v462, %v462
        %v495 = vmul.f32 %v463, %v463
        %v496 = vmul.f32 %v464, %v464
        %v497 = vmul.f32 %v465, %v465
        %v498 = vmul.f32 %v466, %v466
        %v499 = vmul.f32 %v467, %v467
        %v500 = vmul.f32 %v468, %v468
        %v501 = vmul.f32 %v469, %v469
        %v502 = vmul.f32 %v470, %v470
        %v503 = vmul.f32 %v471, %v471
        %v504 = vmul.f32 %v472, %v472
        %v505 = vmul.f32 %v473, %v473
        %v506 = vmul.f32 %v474, %v474
        %v507 = vmul.f32 %v475, %v475
        %v508 = vmul.f32 %v476, %v476
        %v509 = vmul.f32 %v477, %v477
        %v510 = vmul.f32 %v478, %v478
        %511 = vadd.xlane.f32.xlu0 %v479
        %v512 = vpop.xlane.xlu0 %511
        %513 = vadd.xlane.f32.xlu0 %v480
        %v514 = vpop.xlane.xlu0 %513
        %515 = vadd.xlane.f32.xlu0 %v481
        %v516 = vpop.xlane.xlu0 %515
        %517 = vadd.xlane.f32.xlu0 %v482
        %v518 = vpop.xlane.xlu0 %517
        %519 = vadd.xlane.f32.xlu0 %v483
        %v520 = vpop.xlane.xlu0 %519
        %521 = vadd.xlane.f32.xlu0 %v484
        %v522 = vpop.xlane.xlu0 %521
        %523 = vadd.xlane.f32.xlu0 %v485
        %v524 = vpop.xlane.xlu0 %523
        %525 = vadd.xlane.f32.xlu0 %v486
        %v526 = vpop.xlane.xlu0 %525
        %527 = vadd.xlane.f32.xlu0 %v487
        %v528 = vpop.xlane.xlu0 %527
        %529 = vadd.xlane.f32.xlu0 %v488
        %v530 = vpop.xlane.xlu0 %529
        %531 = vadd.xlane.f32.xlu0 %v489
        %v532 = vpop.xlane.xlu0 %531
        %533 = vadd.xlane.f32.xlu0 %v490
        %v534 = vpop.xlane.xlu0 %533
        %535 = vadd.xlane.f32.xlu0 %v491
        %v536 = vpop.xlane.xlu0 %535
        %537 = vadd.xlane.f32.xlu0 %v492
        %v538 = vpop.xlane.xlu0 %537
        %539 = vadd.xlane.f32.xlu0 %v493
        %v540 = vpop.xlane.xlu0 %539
        %541 = vadd.xlane.f32.xlu0 %v494
        %v542 = vpop.xlane.xlu0 %541
        %543 = vadd.xlane.f32.xlu0 %v495
        %v544 = vpop.xlane.xlu0 %543
        %545 = vadd.xlane.f32.xlu0 %v496
        %v546 = vpop.xlane.xlu0 %545
        %547 = vadd.xlane.f32.xlu0 %v497
        %v548 = vpop.xlane.xlu0 %547
        %549 = vadd.xlane.f32.xlu0 %v498
        %v550 = vpop.xlane.xlu0 %549
        %551 = vadd.xlane.f32.xlu0 %v499
        %v552 = vpop.xlane.xlu0 %551
        %553 = vadd.xlane.f32.xlu0 %v500
        %v554 = vpop.xlane.xlu0 %553
        %555 = vadd.xlane.f32.xlu0 %v501
        %v556 = vpop.xlane.xlu0 %555
        %557 = vadd.xlane.f32.xlu0 %v502
        %v558 = vpop.xlane.xlu0 %557
        %559 = vadd.xlane.f32.xlu0 %v503
        %v560 = vpop.xlane.xlu0 %559
        %561 = vadd.xlane.f32.xlu0 %v504
        %v562 = vpop.xlane.xlu0 %561
        %563 = vadd.xlane.f32.xlu0 %v505
        %v564 = vpop.xlane.xlu0 %563
        %565 = vadd.xlane.f32.xlu0 %v506
        %v566 = vpop.xlane.xlu0 %565
        %567 = vadd.xlane.f32.xlu0 %v507
        %v568 = vpop.xlane.xlu0 %567
        %569 = vadd.xlane.f32.xlu0 %v508
        %v570 = vpop.xlane.xlu0 %569
        %571 = vadd.xlane.f32.xlu0 %v509
        %v572 = vpop.xlane.xlu0 %571
        %573 = vadd.xlane.f32.xlu0 %v510
        %v574 = vpop.xlane.xlu0 %573
        %v575 = vmul.f32 %v512, %v414
        %v576 = vmul.f32 %v514, %v414
        %v577 = vmul.f32 %v516, %v414
        %v578 = vmul.f32 %v518, %v414
        %v579 = vmul.f32 %v520, %v414
        %v580 = vmul.f32 %v522, %v414
        %v581 = vmul.f32 %v524, %v414
        %v582 = vmul.f32 %v526, %v414
        %v583 = vmul.f32 %v528, %v414
        %v584 = vmul.f32 %v530, %v414
        %v585 = vmul.f32 %v532, %v414
        %v586 = vmul.f32 %v534, %v414
        %v587 = vmul.f32 %v536, %v414
        %v588 = vmul.f32 %v538, %v414
        %v589 = vmul.f32 %v540, %v414
        %v590 = vmul.f32 %v542, %v414
        %v591 = vmul.f32 %v544, %v414
        %v592 = vmul.f32 %v546, %v414
        %v593 = vmul.f32 %v548, %v414
        %v594 = vmul.f32 %v550, %v414
        %v595 = vmul.f32 %v552, %v414
        %v596 = vmul.f32 %v554, %v414
        %v597 = vmul.f32 %v556, %v414
        %v598 = vmul.f32 %v558, %v414
        %v599 = vmul.f32 %v560, %v414
        %v600 = vmul.f32 %v562, %v414
        %v601 = vmul.f32 %v564, %v414
        %v602 = vmul.f32 %v566, %v414
        %v603 = vmul.f32 %v568, %v414
        %v604 = vmul.f32 %v570, %v414
        %v605 = vmul.f32 %v572, %v414
        %v606 = vmul.f32 %v574, %v414
        %v607 = vmul.f32 %v575, 1.007874
        %v608 = vmul.f32 %v576, 1.007874
        %v609 = vmul.f32 %v577, 1.007874
        %v610 = vmul.f32 %v578, 1.007874
        %v611 = vmul.f32 %v579, 1.007874
        %v612 = vmul.f32 %v580, 1.007874
        %v613 = vmul.f32 %v581, 1.007874
        %v614 = vmul.f32 %v582, 1.007874
        %v615 = vmul.f32 %v583, 1.007874
        %v616 = vmul.f32 %v584, 1.007874
        %v617 = vmul.f32 %v585, 1.007874
        %v618 = vmul.f32 %v586, 1.007874
        %v619 = vmul.f32 %v587, 1.007874
        %v620 = vmul.f32 %v588, 1.007874
        %v621 = vmul.f32 %v589, 1.007874
        %v622 = vmul.f32 %v590, 1.007874
        %v623 = vmul.f32 %v591, 1.007874
        %v624 = vmul.f32 %v592, 1.007874
        %v625 = vmul.f32 %v593, 1.007874
        %v626 = vmul.f32 %v594, 1.007874
        %v627 = vmul.f32 %v595, 1.007874
        %v628 = vmul.f32 %v596, 1.007874
        %v629 = vmul.f32 %v597, 1.007874
        %v630 = vmul.f32 %v598, 1.007874
        %v631 = vmul.f32 %v599, 1.007874
        %v632 = vmul.f32 %v600, 1.007874
        %v633 = vmul.f32 %v601, 1.007874
        %v634 = vmul.f32 %v602, 1.007874
        %v635 = vmul.f32 %v603, 1.007874
        %v636 = vmul.f32 %v604, 1.007874
        %v637 = vmul.f32 %v605, 1.007874
        %v638 = vmul.f32 %v606, 1.007874
        %v639 = vrsqrt.pop %v607
        %v640 = vmul.f32 %v639, %v607
        %v641 = vmul.f32 %v640, %v639
        %v642 = vmul.f32 0.5, %v641
        %v643 = vsub.f32 1.5, %v642
        %v644 = vmul.f32 %v639, %v643
        %v645 = vmul.f32 %v607, %v644
        %vm646 = vcmp.eq.f32.partialorder %v607, inf
        %v647 = vsel %vm646, %v607, %v645
        %vm648 = vcmp.eq.f32.partialorder %v607, 0.0
        %v649 = vand.u32 %v607, 2147483648
        %v650 = vsel %vm648, %v649, %v647
        %v651 = vrsqrt.pop %v608
        %v652 = vmul.f32 %v651, %v608
        %v653 = vmul.f32 %v652, %v651
        %v654 = vmul.f32 0.5, %v653
        %v655 = vsub.f32 1.5, %v654
        %v656 = vmul.f32 %v651, %v655
        %v657 = vmul.f32 %v608, %v656
        %vm658 = vcmp.eq.f32.partialorder %v608, inf
        %v659 = vsel %vm658, %v608, %v657
        %vm660 = vcmp.eq.f32.partialorder %v608, 0.0
        %v661 = vand.u32 %v608, 2147483648
        %v662 = vsel %vm660, %v661, %v659
        %v663 = vrsqrt.pop %v609
        %v664 = vmul.f32 %v663, %v609
        %v665 = vmul.f32 %v664, %v663
        %v666 = vmul.f32 0.5, %v665
        %v667 = vsub.f32 1.5, %v666
        %v668 = vmul.f32 %v663, %v667
        %v669 = vmul.f32 %v609, %v668
        %vm670 = vcmp.eq.f32.partialorder %v609, inf
        %v671 = vsel %vm670, %v609, %v669
        %vm672 = vcmp.eq.f32.partialorder %v609, 0.0
        %v673 = vand.u32 %v609, 2147483648
        %v674 = vsel %vm672, %v673, %v671
        %v675 = vrsqrt.pop %v610
        %v676 = vmul.f32 %v675, %v610
        %v677 = vmul.f32 %v676, %v675
        %v678 = vmul.f32 0.5, %v677
        %v679 = vsub.f32 1.5, %v678
        %v680 = vmul.f32 %v675, %v679
        %v681 = vmul.f32 %v610, %v680
        %vm682 = vcmp.eq.f32.partialorder %v610, inf
        %v683 = vsel %vm682, %v610, %v681
        %vm684 = vcmp.eq.f32.partialorder %v610, 0.0
        %v685 = vand.u32 %v610, 2147483648
        %v686 = vsel %vm684, %v685, %v683
        %v687 = vrsqrt.pop %v611
        %v688 = vmul.f32 %v687, %v611
        %v689 = vmul.f32 %v688, %v687
        %v690 = vmul.f32 0.5, %v689
        %v691 = vsub.f32 1.5, %v690
        %v692 = vmul.f32 %v687, %v691
        %v693 = vmul.f32 %v611, %v692
        %vm694 = vcmp.eq.f32.partialorder %v611, inf
        %v695 = vsel %vm694, %v611, %v693
        %vm696 = vcmp.eq.f32.partialorder %v611, 0.0
        %v697 = vand.u32 %v611, 2147483648
        %v698 = vsel %vm696, %v697, %v695
        %v699 = vrsqrt.pop %v612
        %v700 = vmul.f32 %v699, %v612
        %v701 = vmul.f32 %v700, %v699
        %v702 = vmul.f32 0.5, %v701
        %v703 = vsub.f32 1.5, %v702
        %v704 = vmul.f32 %v699, %v703
        %v705 = vmul.f32 %v612, %v704
        %vm706 = vcmp.eq.f32.partialorder %v612, inf
        %v707 = vsel %vm706, %v612, %v705
        %vm708 = vcmp.eq.f32.partialorder %v612, 0.0
        %v709 = vand.u32 %v612, 2147483648
        %v710 = vsel %vm708, %v709, %v707
        %v711 = vrsqrt.pop %v613
        %v712 = vmul.f32 %v711, %v613
        %v713 = vmul.f32 %v712, %v711
        %v714 = vmul.f32 0.5, %v713
        %v715 = vsub.f32 1.5, %v714
        %v716 = vmul.f32 %v711, %v715
        %v717 = vmul.f32 %v613, %v716
        %vm718 = vcmp.eq.f32.partialorder %v613, inf
        %v719 = vsel %vm718, %v613, %v717
        %vm720 = vcmp.eq.f32.partialorder %v613, 0.0
        %v721 = vand.u32 %v613, 2147483648
        %v722 = vsel %vm720, %v721, %v719
        %v723 = vrsqrt.pop %v614
        %v724 = vmul.f32 %v723, %v614
        %v725 = vmul.f32 %v724, %v723
        %v726 = vmul.f32 0.5, %v725
        %v727 = vsub.f32 1.5, %v726
        %v728 = vmul.f32 %v723, %v727
        %v729 = vmul.f32 %v614, %v728
        %vm730 = vcmp.eq.f32.partialorder %v614, inf
        %v731 = vsel %vm730, %v614, %v729
        %vm732 = vcmp.eq.f32.partialorder %v614, 0.0
        %v733 = vand.u32 %v614, 2147483648
        %v734 = vsel %vm732, %v733, %v731
        %v735 = vrsqrt.pop %v615
        %v736 = vmul.f32 %v735, %v615
        %v737 = vmul.f32 %v736, %v735
        %v738 = vmul.f32 0.5, %v737
        %v739 = vsub.f32 1.5, %v738
        %v740 = vmul.f32 %v735, %v739
        %v741 = vmul.f32 %v615, %v740
        %vm742 = vcmp.eq.f32.partialorder %v615, inf
        %v743 = vsel %vm742, %v615, %v741
        %vm744 = vcmp.eq.f32.partialorder %v615, 0.0
        %v745 = vand.u32 %v615, 2147483648
        %v746 = vsel %vm744, %v745, %v743
        %v747 = vrsqrt.pop %v616
        %v748 = vmul.f32 %v747, %v616
        %v749 = vmul.f32 %v748, %v747
        %v750 = vmul.f32 0.5, %v749
        %v751 = vsub.f32 1.5, %v750
        %v752 = vmul.f32 %v747, %v751
        %v753 = vmul.f32 %v616, %v752
        %vm754 = vcmp.eq.f32.partialorder %v616, inf
        %v755 = vsel %vm754, %v616, %v753
        %vm756 = vcmp.eq.f32.partialorder %v616, 0.0
        %v757 = vand.u32 %v616, 2147483648
        %v758 = vsel %vm756, %v757, %v755
        %v759 = vrsqrt.pop %v617
        %v760 = vmul.f32 %v759, %v617
        %v761 = vmul.f32 %v760, %v759
        %v762 = vmul.f32 0.5, %v761
        %v763 = vsub.f32 1.5, %v762
        %v764 = vmul.f32 %v759, %v763
        %v765 = vmul.f32 %v617, %v764
        %vm766 = vcmp.eq.f32.partialorder %v617, inf
        %v767 = vsel %vm766, %v617, %v765
        %vm768 = vcmp.eq.f32.partialorder %v617, 0.0
        %v769 = vand.u32 %v617, 2147483648
        %v770 = vsel %vm768, %v769, %v767
        %v771 = vrsqrt.pop %v618
        %v772 = vmul.f32 %v771, %v618
        %v773 = vmul.f32 %v772, %v771
        %v774 = vmul.f32 0.5, %v773
        %v775 = vsub.f32 1.5, %v774
        %v776 = vmul.f32 %v771, %v775
        %v777 = vmul.f32 %v618, %v776
        %vm778 = vcmp.eq.f32.partialorder %v618, inf
        %v779 = vsel %vm778, %v618, %v777
        %vm780 = vcmp.eq.f32.partialorder %v618, 0.0
        %v781 = vand.u32 %v618, 2147483648
        %v782 = vsel %vm780, %v781, %v779
        %v783 = vrsqrt.pop %v619
        %v784 = vmul.f32 %v783, %v619
        %v785 = vmul.f32 %v784, %v783
        %v786 = vmul.f32 0.5, %v785
        %v787 = vsub.f32 1.5, %v786
        %v788 = vmul.f32 %v783, %v787
        %v789 = vmul.f32 %v619, %v788
        %vm790 = vcmp.eq.f32.partialorder %v619, inf
        %v791 = vsel %vm790, %v619, %v789
        %vm792 = vcmp.eq.f32.partialorder %v619, 0.0
        %v793 = vand.u32 %v619, 2147483648
        %v794 = vsel %vm792, %v793, %v791
        %v795 = vrsqrt.pop %v620
        %v796 = vmul.f32 %v795, %v620
        %v797 = vmul.f32 %v796, %v795
        %v798 = vmul.f32 0.5, %v797
        %v799 = vsub.f32 1.5, %v798
        %v800 = vmul.f32 %v795, %v799
        %v801 = vmul.f32 %v620, %v800
        %vm802 = vcmp.eq.f32.partialorder %v620, inf
        %v803 = vsel %vm802, %v620, %v801
        %vm804 = vcmp.eq.f32.partialorder %v620, 0.0
        %v805 = vand.u32 %v620, 2147483648
        %v806 = vsel %vm804, %v805, %v803
        %v807 = vrsqrt.pop %v621
        %v808 = vmul.f32 %v807, %v621
        %v809 = vmul.f32 %v808, %v807
        %v810 = vmul.f32 0.5, %v809
        %v811 = vsub.f32 1.5, %v810
        %v812 = vmul.f32 %v807, %v811
        %v813 = vmul.f32 %v621, %v812
        %vm814 = vcmp.eq.f32.partialorder %v621, inf
        %v815 = vsel %vm814, %v621, %v813
        %vm816 = vcmp.eq.f32.partialorder %v621, 0.0
        %v817 = vand.u32 %v621, 2147483648
        %v818 = vsel %vm816, %v817, %v815
        %v819 = vrsqrt.pop %v622
        %v820 = vmul.f32 %v819, %v622
        %v821 = vmul.f32 %v820, %v819
        %v822 = vmul.f32 0.5, %v821
        %v823 = vsub.f32 1.5, %v822
        %v824 = vmul.f32 %v819, %v823
        %v825 = vmul.f32 %v622, %v824
        %vm826 = vcmp.eq.f32.partialorder %v622, inf
        %v827 = vsel %vm826, %v622, %v825
        %vm828 = vcmp.eq.f32.partialorder %v622, 0.0
        %v829 = vand.u32 %v622, 2147483648
        %v830 = vsel %vm828, %v829, %v827
        %v831 = vrsqrt.pop %v623
        %v832 = vmul.f32 %v831, %v623
        %v833 = vmul.f32 %v832, %v831
        %v834 = vmul.f32 0.5, %v833
        %v835 = vsub.f32 1.5, %v834
        %v836 = vmul.f32 %v831, %v835
        %v837 = vmul.f32 %v623, %v836
        %vm838 = vcmp.eq.f32.partialorder %v623, inf
        %v839 = vsel %vm838, %v623, %v837
        %vm840 = vcmp.eq.f32.partialorder %v623, 0.0
        %v841 = vand.u32 %v623, 2147483648
        %v842 = vsel %vm840, %v841, %v839
        %v843 = vrsqrt.pop %v624
        %v844 = vmul.f32 %v843, %v624
        %v845 = vmul.f32 %v844, %v843
        %v846 = vmul.f32 0.5, %v845
        %v847 = vsub.f32 1.5, %v846
        %v848 = vmul.f32 %v843, %v847
        %v849 = vmul.f32 %v624, %v848
        %vm850 = vcmp.eq.f32.partialorder %v624, inf
        %v851 = vsel %vm850, %v624, %v849
        %vm852 = vcmp.eq.f32.partialorder %v624, 0.0
        %v853 = vand.u32 %v624, 2147483648
        %v854 = vsel %vm852, %v853, %v851
        %v855 = vrsqrt.pop %v625
        %v856 = vmul.f32 %v855, %v625
        %v857 = vmul.f32 %v856, %v855
        %v858 = vmul.f32 0.5, %v857
        %v859 = vsub.f32 1.5, %v858
        %v860 = vmul.f32 %v855, %v859
        %v861 = vmul.f32 %v625, %v860
        %vm862 = vcmp.eq.f32.partialorder %v625, inf
        %v863 = vsel %vm862, %v625, %v861
        %vm864 = vcmp.eq.f32.partialorder %v625, 0.0
        %v865 = vand.u32 %v625, 2147483648
        %v866 = vsel %vm864, %v865, %v863
        %v867 = vrsqrt.pop %v626
        %v868 = vmul.f32 %v867, %v626
        %v869 = vmul.f32 %v868, %v867
        %v870 = vmul.f32 0.5, %v869
        %v871 = vsub.f32 1.5, %v870
        %v872 = vmul.f32 %v867, %v871
        %v873 = vmul.f32 %v626, %v872
        %vm874 = vcmp.eq.f32.partialorder %v626, inf
        %v875 = vsel %vm874, %v626, %v873
        %vm876 = vcmp.eq.f32.partialorder %v626, 0.0
        %v877 = vand.u32 %v626, 2147483648
        %v878 = vsel %vm876, %v877, %v875
        %v879 = vrsqrt.pop %v627
        %v880 = vmul.f32 %v879, %v627
        %v881 = vmul.f32 %v880, %v879
        %v882 = vmul.f32 0.5, %v881
        %v883 = vsub.f32 1.5, %v882
        %v884 = vmul.f32 %v879, %v883
        %v885 = vmul.f32 %v627, %v884
        %vm886 = vcmp.eq.f32.partialorder %v627, inf
        %v887 = vsel %vm886, %v627, %v885
        %vm888 = vcmp.eq.f32.partialorder %v627, 0.0
        %v889 = vand.u32 %v627, 2147483648
        %v890 = vsel %vm888, %v889, %v887
        %v891 = vrsqrt.pop %v628
        %v892 = vmul.f32 %v891, %v628
        %v893 = vmul.f32 %v892, %v891
        %v894 = vmul.f32 0.5, %v893
        %v895 = vsub.f32 1.5, %v894
        %v896 = vmul.f32 %v891, %v895
        %v897 = vmul.f32 %v628, %v896
        %vm898 = vcmp.eq.f32.partialorder %v628, inf
        %v899 = vsel %vm898, %v628, %v897
        %vm900 = vcmp.eq.f32.partialorder %v628, 0.0
        %v901 = vand.u32 %v628, 2147483648
        %v902 = vsel %vm900, %v901, %v899
        %v903 = vrsqrt.pop %v629
        %v904 = vmul.f32 %v903, %v629
        %v905 = vmul.f32 %v904, %v903
        %v906 = vmul.f32 0.5, %v905
        %v907 = vsub.f32 1.5, %v906
        %v908 = vmul.f32 %v903, %v907
        %v909 = vmul.f32 %v629, %v908
        %vm910 = vcmp.eq.f32.partialorder %v629, inf
        %v911 = vsel %vm910, %v629, %v909
        %vm912 = vcmp.eq.f32.partialorder %v629, 0.0
        %v913 = vand.u32 %v629, 2147483648
        %v914 = vsel %vm912, %v913, %v911
        %v915 = vrsqrt.pop %v630
        %v916 = vmul.f32 %v915, %v630
        %v917 = vmul.f32 %v916, %v915
        %v918 = vmul.f32 0.5, %v917
        %v919 = vsub.f32 1.5, %v918
        %v920 = vmul.f32 %v915, %v919
        %v921 = vmul.f32 %v630, %v920
        %vm922 = vcmp.eq.f32.partialorder %v630, inf
        %v923 = vsel %vm922, %v630, %v921
        %vm924 = vcmp.eq.f32.partialorder %v630, 0.0
        %v925 = vand.u32 %v630, 2147483648
        %v926 = vsel %vm924, %v925, %v923
        %v927 = vrsqrt.pop %v631
        %v928 = vmul.f32 %v927, %v631
        %v929 = vmul.f32 %v928, %v927
        %v930 = vmul.f32 0.5, %v929
        %v931 = vsub.f32 1.5, %v930
        %v932 = vmul.f32 %v927, %v931
        %v933 = vmul.f32 %v631, %v932
        %vm934 = vcmp.eq.f32.partialorder %v631, inf
        %v935 = vsel %vm934, %v631, %v933
        %vm936 = vcmp.eq.f32.partialorder %v631, 0.0
        %v937 = vand.u32 %v631, 2147483648
        %v938 = vsel %vm936, %v937, %v935
        %v939 = vrsqrt.pop %v632
        %v940 = vmul.f32 %v939, %v632
        %v941 = vmul.f32 %v940, %v939
        %v942 = vmul.f32 0.5, %v941
        %v943 = vsub.f32 1.5, %v942
        %v944 = vmul.f32 %v939, %v943
        %v945 = vmul.f32 %v632, %v944
        %vm946 = vcmp.eq.f32.partialorder %v632, inf
        %v947 = vsel %vm946, %v632, %v945
        %vm948 = vcmp.eq.f32.partialorder %v632, 0.0
        %v949 = vand.u32 %v632, 2147483648
        %v950 = vsel %vm948, %v949, %v947
        %v951 = vrsqrt.pop %v633
        %v952 = vmul.f32 %v951, %v633
        %v953 = vmul.f32 %v952, %v951
        %v954 = vmul.f32 0.5, %v953
        %v955 = vsub.f32 1.5, %v954
        %v956 = vmul.f32 %v951, %v955
        %v957 = vmul.f32 %v633, %v956
        %vm958 = vcmp.eq.f32.partialorder %v633, inf
        %v959 = vsel %vm958, %v633, %v957
        %vm960 = vcmp.eq.f32.partialorder %v633, 0.0
        %v961 = vand.u32 %v633, 2147483648
        %v962 = vsel %vm960, %v961, %v959
        %v963 = vrsqrt.pop %v634
        %v964 = vmul.f32 %v963, %v634
        %v965 = vmul.f32 %v964, %v963
        %v966 = vmul.f32 0.5, %v965
        %v967 = vsub.f32 1.5, %v966
        %v968 = vmul.f32 %v963, %v967
        %v969 = vmul.f32 %v634, %v968
        %vm970 = vcmp.eq.f32.partialorder %v634, inf
        %v971 = vsel %vm970, %v634, %v969
        %vm972 = vcmp.eq.f32.partialorder %v634, 0.0
        %v973 = vand.u32 %v634, 2147483648
        %v974 = vsel %vm972, %v973, %v971
        %v975 = vrsqrt.pop %v635
        %v976 = vmul.f32 %v975, %v635
        %v977 = vmul.f32 %v976, %v975
        %v978 = vmul.f32 0.5, %v977
        %v979 = vsub.f32 1.5, %v978
        %v980 = vmul.f32 %v975, %v979
        %v981 = vmul.f32 %v635, %v980
        %vm982 = vcmp.eq.f32.partialorder %v635, inf
        %v983 = vsel %vm982, %v635, %v981
        %vm984 = vcmp.eq.f32.partialorder %v635, 0.0
        %v985 = vand.u32 %v635, 2147483648
        %v986 = vsel %vm984, %v985, %v983
        %v987 = vrsqrt.pop %v636
        %v988 = vmul.f32 %v987, %v636
        %v989 = vmul.f32 %v988, %v987
        %v990 = vmul.f32 0.5, %v989
        %v991 = vsub.f32 1.5, %v990
        %v992 = vmul.f32 %v987, %v991
        %v993 = vmul.f32 %v636, %v992
        %vm994 = vcmp.eq.f32.partialorder %v636, inf
        %v995 = vsel %vm994, %v636, %v993
        %vm996 = vcmp.eq.f32.partialorder %v636, 0.0
        %v997 = vand.u32 %v636, 2147483648
        %v998 = vsel %vm996, %v997, %v995
        %v999 = vrsqrt.pop %v637
        %v1000 = vmul.f32 %v999, %v637
        %v1001 = vmul.f32 %v1000, %v999
        %v1002 = vmul.f32 0.5, %v1001
        %v1003 = vsub.f32 1.5, %v1002
        %v1004 = vmul.f32 %v999, %v1003
        %v1005 = vmul.f32 %v637, %v1004
        %vm1006 = vcmp.eq.f32.partialorder %v637, inf
        %v1007 = vsel %vm1006, %v637, %v1005
        %vm1008 = vcmp.eq.f32.partialorder %v637, 0.0
        %v1009 = vand.u32 %v637, 2147483648
        %v1010 = vsel %vm1008, %v1009, %v1007
        %v1011 = vrsqrt.pop %v638
        %v1012 = vmul.f32 %v1011, %v638
        %v1013 = vmul.f32 %v1012, %v1011
        %v1014 = vmul.f32 0.5, %v1013
        %v1015 = vsub.f32 1.5, %v1014
        %v1016 = vmul.f32 %v1011, %v1015
        %v1017 = vmul.f32 %v638, %v1016
        %vm1018 = vcmp.eq.f32.partialorder %v638, inf
        %v1019 = vsel %vm1018, %v638, %v1017
        %vm1020 = vcmp.eq.f32.partialorder %v638, 0.0
        %v1021 = vand.u32 %v638, 2147483648
        %v1022 = vsel %vm1020, %v1021, %v1019
        %v1023 = vadd.f32 %v650, 1e-06
        %v1024 = vadd.f32 %v662, 1e-06
        %v1025 = vadd.f32 %v674, 1e-06
        %v1026 = vadd.f32 %v686, 1e-06
        %v1027 = vadd.f32 %v698, 1e-06
        %v1028 = vadd.f32 %v710, 1e-06
        %v1029 = vadd.f32 %v722, 1e-06
        %v1030 = vadd.f32 %v734, 1e-06
        %v1031 = vadd.f32 %v746, 1e-06
        %v1032 = vadd.f32 %v758, 1e-06
        %v1033 = vadd.f32 %v770, 1e-06
        %v1034 = vadd.f32 %v782, 1e-06
        %v1035 = vadd.f32 %v794, 1e-06
        %v1036 = vadd.f32 %v806, 1e-06
        %v1037 = vadd.f32 %v818, 1e-06
        %v1038 = vadd.f32 %v830, 1e-06
        %v1039 = vadd.f32 %v842, 1e-06
        %v1040 = vadd.f32 %v854, 1e-06
        %v1041 = vadd.f32 %v866, 1e-06
        %v1042 = vadd.f32 %v878, 1e-06
        %v1043 = vadd.f32 %v890, 1e-06
        %v1044 = vadd.f32 %v902, 1e-06
        %v1045 = vadd.f32 %v914, 1e-06
        %v1046 = vadd.f32 %v926, 1e-06
        %v1047 = vadd.f32 %v938, 1e-06
        %v1048 = vadd.f32 %v950, 1e-06
        %v1049 = vadd.f32 %v962, 1e-06
        %v1050 = vadd.f32 %v974, 1e-06
        %v1051 = vadd.f32 %v986, 1e-06
        %v1052 = vadd.f32 %v998, 1e-06
        %v1053 = vadd.f32 %v1010, 1e-06
        %v1054 = vadd.f32 %v1022, 1e-06
        %v1055 = vrcp.pop %v1023
        %v1056 = vmul.f32 %v1023, %v1055
        %v1057 = vsub.f32 1.0, %v1056
        %v1058 = vmul.f32 %v1055, %v1057
        %v1059 = vadd.f32 %v1055, %v1058
        %vm1060 = vweird.f32 %v1023
        %vm1061 = vweird.f32 %v1055
        %vm1062 = vmor %vm1060, %vm1061
        %v1063 = vsel %vm1062, %v1055, %v1059
        %v1064 = vand.u32 2147483647, %v1023
        %vm1065 = vcmp.eq.f32.partialorder %v1064, 8.507059e+37
        %v1066 = vand.u32 %v1023, 2147483648
        %v1067 = vor.u32 1.1754944e-38, %v1066
        %v1068 = vsel %vm1065, %v1067, %v1063
        %v1069 = vmul.f32 %v447, %v1068
        %v1070 = vrcp.pop %v1024
        %v1071 = vmul.f32 %v1024, %v1070
        %v1072 = vsub.f32 1.0, %v1071
        %v1073 = vmul.f32 %v1070, %v1072
        %v1074 = vadd.f32 %v1070, %v1073
        %vm1075 = vweird.f32 %v1024
        %vm1076 = vweird.f32 %v1070
        %vm1077 = vmor %vm1075, %vm1076
        %v1078 = vsel %vm1077, %v1070, %v1074
        %v1079 = vand.u32 2147483647, %v1024
        %vm1080 = vcmp.eq.f32.partialorder %v1079, 8.507059e+37
        %v1081 = vand.u32 %v1024, 2147483648
        %v1082 = vor.u32 1.1754944e-38, %v1081
        %v1083 = vsel %vm1080, %v1082, %v1078
        %v1084 = vmul.f32 %v448, %v1083
        %v1085 = vrcp.pop %v1025
        %v1086 = vmul.f32 %v1025, %v1085
        %v1087 = vsub.f32 1.0, %v1086
        %v1088 = vmul.f32 %v1085, %v1087
        %v1089 = vadd.f32 %v1085, %v1088
        %vm1090 = vweird.f32 %v1025
        %vm1091 = vweird.f32 %v1085
        %vm1092 = vmor %vm1090, %vm1091
        %v1093 = vsel %vm1092, %v1085, %v1089
        %v1094 = vand.u32 2147483647, %v1025
        %vm1095 = vcmp.eq.f32.partialorder %v1094, 8.507059e+37
        %v1096 = vand.u32 %v1025, 2147483648
        %v1097 = vor.u32 1.1754944e-38, %v1096
        %v1098 = vsel %vm1095, %v1097, %v1093
        %v1099 = vmul.f32 %v449, %v1098
        %v1100 = vrcp.pop %v1026
        %v1101 = vmul.f32 %v1026, %v1100
        %v1102 = vsub.f32 1.0, %v1101
        %v1103 = vmul.f32 %v1100, %v1102
        %v1104 = vadd.f32 %v1100, %v1103
        %vm1105 = vweird.f32 %v1026
        %vm1106 = vweird.f32 %v1100
        %vm1107 = vmor %vm1105, %vm1106
        %v1108 = vsel %vm1107, %v1100, %v1104
        %v1109 = vand.u32 2147483647, %v1026
        %vm1110 = vcmp.eq.f32.partialorder %v1109, 8.507059e+37
        %v1111 = vand.u32 %v1026, 2147483648
        %v1112 = vor.u32 1.1754944e-38, %v1111
        %v1113 = vsel %vm1110, %v1112, %v1108
        %v1114 = vmul.f32 %v450, %v1113
        %v1115 = vrcp.pop %v1027
        %v1116 = vmul.f32 %v1027, %v1115
        %v1117 = vsub.f32 1.0, %v1116
        %v1118 = vmul.f32 %v1115, %v1117
        %v1119 = vadd.f32 %v1115, %v1118
        %vm1120 = vweird.f32 %v1027
        %vm1121 = vweird.f32 %v1115
        %vm1122 = vmor %vm1120, %vm1121
        %v1123 = vsel %vm1122, %v1115, %v1119
        %v1124 = vand.u32 2147483647, %v1027
        %vm1125 = vcmp.eq.f32.partialorder %v1124, 8.507059e+37
        %v1126 = vand.u32 %v1027, 2147483648
        %v1127 = vor.u32 1.1754944e-38, %v1126
        %v1128 = vsel %vm1125, %v1127, %v1123
        %v1129 = vmul.f32 %v451, %v1128
        %v1130 = vrcp.pop %v1028
        %v1131 = vmul.f32 %v1028, %v1130
        %v1132 = vsub.f32 1.0, %v1131
        %v1133 = vmul.f32 %v1130, %v1132
        %v1134 = vadd.f32 %v1130, %v1133
        %vm1135 = vweird.f32 %v1028
        %vm1136 = vweird.f32 %v1130
        %vm1137 = vmor %vm1135, %vm1136
        %v1138 = vsel %vm1137, %v1130, %v1134
        %v1139 = vand.u32 2147483647, %v1028
        %vm1140 = vcmp.eq.f32.partialorder %v1139, 8.507059e+37
        %v1141 = vand.u32 %v1028, 2147483648
        %v1142 = vor.u32 1.1754944e-38, %v1141
        %v1143 = vsel %vm1140, %v1142, %v1138
        %v1144 = vmul.f32 %v452, %v1143
        %v1145 = vrcp.pop %v1029
        %v1146 = vmul.f32 %v1029, %v1145
        %v1147 = vsub.f32 1.0, %v1146
        %v1148 = vmul.f32 %v1145, %v1147
        %v1149 = vadd.f32 %v1145, %v1148
        %vm1150 = vweird.f32 %v1029
        %vm1151 = vweird.f32 %v1145
        %vm1152 = vmor %vm1150, %vm1151
        %v1153 = vsel %vm1152, %v1145, %v1149
        %v1154 = vand.u32 2147483647, %v1029
        %vm1155 = vcmp.eq.f32.partialorder %v1154, 8.507059e+37
        %v1156 = vand.u32 %v1029, 2147483648
        %v1157 = vor.u32 1.1754944e-38, %v1156
        %v1158 = vsel %vm1155, %v1157, %v1153
        %v1159 = vmul.f32 %v453, %v1158
        %v1160 = vrcp.pop %v1030
        %v1161 = vmul.f32 %v1030, %v1160
        %v1162 = vsub.f32 1.0, %v1161
        %v1163 = vmul.f32 %v1160, %v1162
        %v1164 = vadd.f32 %v1160, %v1163
        %vm1165 = vweird.f32 %v1030
        %vm1166 = vweird.f32 %v1160
        %vm1167 = vmor %vm1165, %vm1166
        %v1168 = vsel %vm1167, %v1160, %v1164
        %v1169 = vand.u32 2147483647, %v1030
        %vm1170 = vcmp.eq.f32.partialorder %v1169, 8.507059e+37
        %v1171 = vand.u32 %v1030, 2147483648
        %v1172 = vor.u32 1.1754944e-38, %v1171
        %v1173 = vsel %vm1170, %v1172, %v1168
        %v1174 = vmul.f32 %v454, %v1173
        %v1175 = vrcp.pop %v1031
        %v1176 = vmul.f32 %v1031, %v1175
        %v1177 = vsub.f32 1.0, %v1176
        %v1178 = vmul.f32 %v1175, %v1177
        %v1179 = vadd.f32 %v1175, %v1178
        %vm1180 = vweird.f32 %v1031
        %vm1181 = vweird.f32 %v1175
        %vm1182 = vmor %vm1180, %vm1181
        %v1183 = vsel %vm1182, %v1175, %v1179
        %v1184 = vand.u32 2147483647, %v1031
        %vm1185 = vcmp.eq.f32.partialorder %v1184, 8.507059e+37
        %v1186 = vand.u32 %v1031, 2147483648
        %v1187 = vor.u32 1.1754944e-38, %v1186
        %v1188 = vsel %vm1185, %v1187, %v1183
        %v1189 = vmul.f32 %v455, %v1188
        %v1190 = vrcp.pop %v1032
        %v1191 = vmul.f32 %v1032, %v1190
        %v1192 = vsub.f32 1.0, %v1191
        %v1193 = vmul.f32 %v1190, %v1192
        %v1194 = vadd.f32 %v1190, %v1193
        %vm1195 = vweird.f32 %v1032
        %vm1196 = vweird.f32 %v1190
        %vm1197 = vmor %vm1195, %vm1196
        %v1198 = vsel %vm1197, %v1190, %v1194
        %v1199 = vand.u32 2147483647, %v1032
        %vm1200 = vcmp.eq.f32.partialorder %v1199, 8.507059e+37
        %v1201 = vand.u32 %v1032, 2147483648
        %v1202 = vor.u32 1.1754944e-38, %v1201
        %v1203 = vsel %vm1200, %v1202, %v1198
        %v1204 = vmul.f32 %v456, %v1203
        %v1205 = vrcp.pop %v1033
        %v1206 = vmul.f32 %v1033, %v1205
        %v1207 = vsub.f32 1.0, %v1206
        %v1208 = vmul.f32 %v1205, %v1207
        %v1209 = vadd.f32 %v1205, %v1208
        %vm1210 = vweird.f32 %v1033
        %vm1211 = vweird.f32 %v1205
        %vm1212 = vmor %vm1210, %vm1211
        %v1213 = vsel %vm1212, %v1205, %v1209
        %v1214 = vand.u32 2147483647, %v1033
        %vm1215 = vcmp.eq.f32.partialorder %v1214, 8.507059e+37
        %v1216 = vand.u32 %v1033, 2147483648
        %v1217 = vor.u32 1.1754944e-38, %v1216
        %v1218 = vsel %vm1215, %v1217, %v1213
        %v1219 = vmul.f32 %v457, %v1218
        %v1220 = vrcp.pop %v1034
        %v1221 = vmul.f32 %v1034, %v1220
        %v1222 = vsub.f32 1.0, %v1221
        %v1223 = vmul.f32 %v1220, %v1222
        %v1224 = vadd.f32 %v1220, %v1223
        %vm1225 = vweird.f32 %v1034
        %vm1226 = vweird.f32 %v1220
        %vm1227 = vmor %vm1225, %vm1226
        %v1228 = vsel %vm1227, %v1220, %v1224
        %v1229 = vand.u32 2147483647, %v1034
        %vm1230 = vcmp.eq.f32.partialorder %v1229, 8.507059e+37
        %v1231 = vand.u32 %v1034, 2147483648
        %v1232 = vor.u32 1.1754944e-38, %v1231
        %v1233 = vsel %vm1230, %v1232, %v1228
        %v1234 = vmul.f32 %v458, %v1233
        %v1235 = vrcp.pop %v1035
        %v1236 = vmul.f32 %v1035, %v1235
        %v1237 = vsub.f32 1.0, %v1236
        %v1238 = vmul.f32 %v1235, %v1237
        %v1239 = vadd.f32 %v1235, %v1238
        %vm1240 = vweird.f32 %v1035
        %vm1241 = vweird.f32 %v1235
        %vm1242 = vmor %vm1240, %vm1241
        %v1243 = vsel %vm1242, %v1235, %v1239
        %v1244 = vand.u32 2147483647, %v1035
        %vm1245 = vcmp.eq.f32.partialorder %v1244, 8.507059e+37
        %v1246 = vand.u32 %v1035, 2147483648
        %v1247 = vor.u32 1.1754944e-38, %v1246
        %v1248 = vsel %vm1245, %v1247, %v1243
        %v1249 = vmul.f32 %v459, %v1248
        %v1250 = vrcp.pop %v1036
        %v1251 = vmul.f32 %v1036, %v1250
        %v1252 = vsub.f32 1.0, %v1251
        %v1253 = vmul.f32 %v1250, %v1252
        %v1254 = vadd.f32 %v1250, %v1253
        %vm1255 = vweird.f32 %v1036
        %vm1256 = vweird.f32 %v1250
        %vm1257 = vmor %vm1255, %vm1256
        %v1258 = vsel %vm1257, %v1250, %v1254
        %v1259 = vand.u32 2147483647, %v1036
        %vm1260 = vcmp.eq.f32.partialorder %v1259, 8.507059e+37
        %v1261 = vand.u32 %v1036, 2147483648
        %v1262 = vor.u32 1.1754944e-38, %v1261
        %v1263 = vsel %vm1260, %v1262, %v1258
        %v1264 = vmul.f32 %v460, %v1263
        %v1265 = vrcp.pop %v1037
        %v1266 = vmul.f32 %v1037, %v1265
        %v1267 = vsub.f32 1.0, %v1266
        %v1268 = vmul.f32 %v1265, %v1267
        %v1269 = vadd.f32 %v1265, %v1268
        %vm1270 = vweird.f32 %v1037
        %vm1271 = vweird.f32 %v1265
        %vm1272 = vmor %vm1270, %vm1271
        %v1273 = vsel %vm1272, %v1265, %v1269
        %v1274 = vand.u32 2147483647, %v1037
        %vm1275 = vcmp.eq.f32.partialorder %v1274, 8.507059e+37
        %v1276 = vand.u32 %v1037, 2147483648
        %v1277 = vor.u32 1.1754944e-38, %v1276
        %v1278 = vsel %vm1275, %v1277, %v1273
        %v1279 = vmul.f32 %v461, %v1278
        %v1280 = vrcp.pop %v1038
        %v1281 = vmul.f32 %v1038, %v1280
        %v1282 = vsub.f32 1.0, %v1281
        %v1283 = vmul.f32 %v1280, %v1282
        %v1284 = vadd.f32 %v1280, %v1283
        %vm1285 = vweird.f32 %v1038
        %vm1286 = vweird.f32 %v1280
        %vm1287 = vmor %vm1285, %vm1286
        %v1288 = vsel %vm1287, %v1280, %v1284
        %v1289 = vand.u32 2147483647, %v1038
        %vm1290 = vcmp.eq.f32.partialorder %v1289, 8.507059e+37
        %v1291 = vand.u32 %v1038, 2147483648
        %v1292 = vor.u32 1.1754944e-38, %v1291
        %v1293 = vsel %vm1290, %v1292, %v1288
        %v1294 = vmul.f32 %v462, %v1293
        %v1295 = vrcp.pop %v1039
        %v1296 = vmul.f32 %v1039, %v1295
        %v1297 = vsub.f32 1.0, %v1296
        %v1298 = vmul.f32 %v1295, %v1297
        %v1299 = vadd.f32 %v1295, %v1298
        %vm1300 = vweird.f32 %v1039
        %vm1301 = vweird.f32 %v1295
        %vm1302 = vmor %vm1300, %vm1301
        %v1303 = vsel %vm1302, %v1295, %v1299
        %v1304 = vand.u32 2147483647, %v1039
        %vm1305 = vcmp.eq.f32.partialorder %v1304, 8.507059e+37
        %v1306 = vand.u32 %v1039, 2147483648
        %v1307 = vor.u32 1.1754944e-38, %v1306
        %v1308 = vsel %vm1305, %v1307, %v1303
        %v1309 = vmul.f32 %v463, %v1308
        %v1310 = vrcp.pop %v1040
        %v1311 = vmul.f32 %v1040, %v1310
        %v1312 = vsub.f32 1.0, %v1311
        %v1313 = vmul.f32 %v1310, %v1312
        %v1314 = vadd.f32 %v1310, %v1313
        %vm1315 = vweird.f32 %v1040
        %vm1316 = vweird.f32 %v1310
        %vm1317 = vmor %vm1315, %vm1316
        %v1318 = vsel %vm1317, %v1310, %v1314
        %v1319 = vand.u32 2147483647, %v1040
        %vm1320 = vcmp.eq.f32.partialorder %v1319, 8.507059e+37
        %v1321 = vand.u32 %v1040, 2147483648
        %v1322 = vor.u32 1.1754944e-38, %v1321
        %v1323 = vsel %vm1320, %v1322, %v1318
        %v1324 = vmul.f32 %v464, %v1323
        %v1325 = vrcp.pop %v1041
        %v1326 = vmul.f32 %v1041, %v1325
        %v1327 = vsub.f32 1.0, %v1326
        %v1328 = vmul.f32 %v1325, %v1327
        %v1329 = vadd.f32 %v1325, %v1328
        %vm1330 = vweird.f32 %v1041
        %vm1331 = vweird.f32 %v1325
        %vm1332 = vmor %vm1330, %vm1331
        %v1333 = vsel %vm1332, %v1325, %v1329
        %v1334 = vand.u32 2147483647, %v1041
        %vm1335 = vcmp.eq.f32.partialorder %v1334, 8.507059e+37
        %v1336 = vand.u32 %v1041, 2147483648
        %v1337 = vor.u32 1.1754944e-38, %v1336
        %v1338 = vsel %vm1335, %v1337, %v1333
        %v1339 = vmul.f32 %v465, %v1338
        %v1340 = vrcp.pop %v1042
        %v1341 = vmul.f32 %v1042, %v1340
        %v1342 = vsub.f32 1.0, %v1341
        %v1343 = vmul.f32 %v1340, %v1342
        %v1344 = vadd.f32 %v1340, %v1343
        %vm1345 = vweird.f32 %v1042
        %vm1346 = vweird.f32 %v1340
        %vm1347 = vmor %vm1345, %vm1346
        %v1348 = vsel %vm1347, %v1340, %v1344
        %v1349 = vand.u32 2147483647, %v1042
        %vm1350 = vcmp.eq.f32.partialorder %v1349, 8.507059e+37
        %v1351 = vand.u32 %v1042, 2147483648
        %v1352 = vor.u32 1.1754944e-38, %v1351
        %v1353 = vsel %vm1350, %v1352, %v1348
        %v1354 = vmul.f32 %v466, %v1353
        %v1355 = vrcp.pop %v1043
        %v1356 = vmul.f32 %v1043, %v1355
        %v1357 = vsub.f32 1.0, %v1356
        %v1358 = vmul.f32 %v1355, %v1357
        %v1359 = vadd.f32 %v1355, %v1358
        %vm1360 = vweird.f32 %v1043
        %vm1361 = vweird.f32 %v1355
        %vm1362 = vmor %vm1360, %vm1361
        %v1363 = vsel %vm1362, %v1355, %v1359
        %v1364 = vand.u32 2147483647, %v1043
        %vm1365 = vcmp.eq.f32.partialorder %v1364, 8.507059e+37
        %v1366 = vand.u32 %v1043, 2147483648
        %v1367 = vor.u32 1.1754944e-38, %v1366
        %v1368 = vsel %vm1365, %v1367, %v1363
        %v1369 = vmul.f32 %v467, %v1368
        %v1370 = vrcp.pop %v1044
        %v1371 = vmul.f32 %v1044, %v1370
        %v1372 = vsub.f32 1.0, %v1371
        %v1373 = vmul.f32 %v1370, %v1372
        %v1374 = vadd.f32 %v1370, %v1373
        %vm1375 = vweird.f32 %v1044
        %vm1376 = vweird.f32 %v1370
        %vm1377 = vmor %vm1375, %vm1376
        %v1378 = vsel %vm1377, %v1370, %v1374
        %v1379 = vand.u32 2147483647, %v1044
        %vm1380 = vcmp.eq.f32.partialorder %v1379, 8.507059e+37
        %v1381 = vand.u32 %v1044, 2147483648
        %v1382 = vor.u32 1.1754944e-38, %v1381
        %v1383 = vsel %vm1380, %v1382, %v1378
        %v1384 = vmul.f32 %v468, %v1383
        %v1385 = vrcp.pop %v1045
        %v1386 = vmul.f32 %v1045, %v1385
        %v1387 = vsub.f32 1.0, %v1386
        %v1388 = vmul.f32 %v1385, %v1387
        %v1389 = vadd.f32 %v1385, %v1388
        %vm1390 = vweird.f32 %v1045
        %vm1391 = vweird.f32 %v1385
        %vm1392 = vmor %vm1390, %vm1391
        %v1393 = vsel %vm1392, %v1385, %v1389
        %v1394 = vand.u32 2147483647, %v1045
        %vm1395 = vcmp.eq.f32.partialorder %v1394, 8.507059e+37
        %v1396 = vand.u32 %v1045, 2147483648
        %v1397 = vor.u32 1.1754944e-38, %v1396
        %v1398 = vsel %vm1395, %v1397, %v1393
        %v1399 = vmul.f32 %v469, %v1398
        %v1400 = vrcp.pop %v1046
        %v1401 = vmul.f32 %v1046, %v1400
        %v1402 = vsub.f32 1.0, %v1401
        %v1403 = vmul.f32 %v1400, %v1402
        %v1404 = vadd.f32 %v1400, %v1403
        %vm1405 = vweird.f32 %v1046
        %vm1406 = vweird.f32 %v1400
        %vm1407 = vmor %vm1405, %vm1406
        %v1408 = vsel %vm1407, %v1400, %v1404
        %v1409 = vand.u32 2147483647, %v1046
        %vm1410 = vcmp.eq.f32.partialorder %v1409, 8.507059e+37
        %v1411 = vand.u32 %v1046, 2147483648
        %v1412 = vor.u32 1.1754944e-38, %v1411
        %v1413 = vsel %vm1410, %v1412, %v1408
        %v1414 = vmul.f32 %v470, %v1413
        %v1415 = vrcp.pop %v1047
        %v1416 = vmul.f32 %v1047, %v1415
        %v1417 = vsub.f32 1.0, %v1416
        %v1418 = vmul.f32 %v1415, %v1417
        %v1419 = vadd.f32 %v1415, %v1418
        %vm1420 = vweird.f32 %v1047
        %vm1421 = vweird.f32 %v1415
        %vm1422 = vmor %vm1420, %vm1421
        %v1423 = vsel %vm1422, %v1415, %v1419
        %v1424 = vand.u32 2147483647, %v1047
        %vm1425 = vcmp.eq.f32.partialorder %v1424, 8.507059e+37
        %v1426 = vand.u32 %v1047, 2147483648
        %v1427 = vor.u32 1.1754944e-38, %v1426
        %v1428 = vsel %vm1425, %v1427, %v1423
        %v1429 = vmul.f32 %v471, %v1428
        %v1430 = vrcp.pop %v1048
        %v1431 = vmul.f32 %v1048, %v1430
        %v1432 = vsub.f32 1.0, %v1431
        %v1433 = vmul.f32 %v1430, %v1432
        %v1434 = vadd.f32 %v1430, %v1433
        %vm1435 = vweird.f32 %v1048
        %vm1436 = vweird.f32 %v1430
        %vm1437 = vmor %vm1435, %vm1436
        %v1438 = vsel %vm1437, %v1430, %v1434
        %v1439 = vand.u32 2147483647, %v1048
        %vm1440 = vcmp.eq.f32.partialorder %v1439, 8.507059e+37
        %v1441 = vand.u32 %v1048, 2147483648
        %v1442 = vor.u32 1.1754944e-38, %v1441
        %v1443 = vsel %vm1440, %v1442, %v1438
        %v1444 = vmul.f32 %v472, %v1443
        %v1445 = vrcp.pop %v1049
        %v1446 = vmul.f32 %v1049, %v1445
        %v1447 = vsub.f32 1.0, %v1446
        %v1448 = vmul.f32 %v1445, %v1447
        %v1449 = vadd.f32 %v1445, %v1448
        %vm1450 = vweird.f32 %v1049
        %vm1451 = vweird.f32 %v1445
        %vm1452 = vmor %vm1450, %vm1451
        %v1453 = vsel %vm1452, %v1445, %v1449
        %v1454 = vand.u32 2147483647, %v1049
        %vm1455 = vcmp.eq.f32.partialorder %v1454, 8.507059e+37
        %v1456 = vand.u32 %v1049, 2147483648
        %v1457 = vor.u32 1.1754944e-38, %v1456
        %v1458 = vsel %vm1455, %v1457, %v1453
        %v1459 = vmul.f32 %v473, %v1458
        %v1460 = vrcp.pop %v1050
        %v1461 = vmul.f32 %v1050, %v1460
        %v1462 = vsub.f32 1.0, %v1461
        %v1463 = vmul.f32 %v1460, %v1462
        %v1464 = vadd.f32 %v1460, %v1463
        %vm1465 = vweird.f32 %v1050
        %vm1466 = vweird.f32 %v1460
        %vm1467 = vmor %vm1465, %vm1466
        %v1468 = vsel %vm1467, %v1460, %v1464
        %v1469 = vand.u32 2147483647, %v1050
        %vm1470 = vcmp.eq.f32.partialorder %v1469, 8.507059e+37
        %v1471 = vand.u32 %v1050, 2147483648
        %v1472 = vor.u32 1.1754944e-38, %v1471
        %v1473 = vsel %vm1470, %v1472, %v1468
        %v1474 = vmul.f32 %v474, %v1473
        %v1475 = vrcp.pop %v1051
        %v1476 = vmul.f32 %v1051, %v1475
        %v1477 = vsub.f32 1.0, %v1476
        %v1478 = vmul.f32 %v1475, %v1477
        %v1479 = vadd.f32 %v1475, %v1478
        %vm1480 = vweird.f32 %v1051
        %vm1481 = vweird.f32 %v1475
        %vm1482 = vmor %vm1480, %vm1481
        %v1483 = vsel %vm1482, %v1475, %v1479
        %v1484 = vand.u32 2147483647, %v1051
        %vm1485 = vcmp.eq.f32.partialorder %v1484, 8.507059e+37
        %v1486 = vand.u32 %v1051, 2147483648
        %v1487 = vor.u32 1.1754944e-38, %v1486
        %v1488 = vsel %vm1485, %v1487, %v1483
        %v1489 = vmul.f32 %v475, %v1488
        %v1490 = vrcp.pop %v1052
        %v1491 = vmul.f32 %v1052, %v1490
        %v1492 = vsub.f32 1.0, %v1491
        %v1493 = vmul.f32 %v1490, %v1492
        %v1494 = vadd.f32 %v1490, %v1493
        %vm1495 = vweird.f32 %v1052
        %vm1496 = vweird.f32 %v1490
        %vm1497 = vmor %vm1495, %vm1496
        %v1498 = vsel %vm1497, %v1490, %v1494
        %v1499 = vand.u32 2147483647, %v1052
        %vm1500 = vcmp.eq.f32.partialorder %v1499, 8.507059e+37
        %v1501 = vand.u32 %v1052, 2147483648
        %v1502 = vor.u32 1.1754944e-38, %v1501
        %v1503 = vsel %vm1500, %v1502, %v1498
        %v1504 = vmul.f32 %v476, %v1503
        %v1505 = vrcp.pop %v1053
        %v1506 = vmul.f32 %v1053, %v1505
        %v1507 = vsub.f32 1.0, %v1506
        %v1508 = vmul.f32 %v1505, %v1507
        %v1509 = vadd.f32 %v1505, %v1508
        %vm1510 = vweird.f32 %v1053
        %vm1511 = vweird.f32 %v1505
        %vm1512 = vmor %vm1510, %vm1511
        %v1513 = vsel %vm1512, %v1505, %v1509
        %v1514 = vand.u32 2147483647, %v1053
        %vm1515 = vcmp.eq.f32.partialorder %v1514, 8.507059e+37
        %v1516 = vand.u32 %v1053, 2147483648
        %v1517 = vor.u32 1.1754944e-38, %v1516
        %v1518 = vsel %vm1515, %v1517, %v1513
        %v1519 = vmul.f32 %v477, %v1518
        %v1520 = vrcp.pop %v1054
        %v1521 = vmul.f32 %v1054, %v1520
        %v1522 = vsub.f32 1.0, %v1521
        %v1523 = vmul.f32 %v1520, %v1522
        %v1524 = vadd.f32 %v1520, %v1523
        %vm1525 = vweird.f32 %v1054
        %vm1526 = vweird.f32 %v1520
        %vm1527 = vmor %vm1525, %vm1526
        %v1528 = vsel %vm1527, %v1520, %v1524
        %v1529 = vand.u32 2147483647, %v1054
        %vm1530 = vcmp.eq.f32.partialorder %v1529, 8.507059e+37
        %v1531 = vand.u32 %v1054, 2147483648
        %v1532 = vor.u32 1.1754944e-38, %v1531
        %v1533 = vsel %vm1530, %v1532, %v1528
        %v1534 = vmul.f32 %v478, %v1533
        %v1536 = vperm.slane %v342, 0
        %v1538 = vmul.f32 %v1069, %v1536
        %v1539 = vmul.f32 %v1084, %v1536
        %v1540 = vmul.f32 %v1099, %v1536
        %v1541 = vmul.f32 %v1114, %v1536
        %v1542 = vmul.f32 %v1129, %v1536
        %v1543 = vmul.f32 %v1144, %v1536
        %v1544 = vmul.f32 %v1159, %v1536
        %v1545 = vmul.f32 %v1174, %v1536
        %v1546 = vmul.f32 %v1189, %v1536
        %v1547 = vmul.f32 %v1204, %v1536
        %v1548 = vmul.f32 %v1219, %v1536
        %v1549 = vmul.f32 %v1234, %v1536
        %v1550 = vmul.f32 %v1249, %v1536
        %v1551 = vmul.f32 %v1264, %v1536
        %v1552 = vmul.f32 %v1279, %v1536
        %v1553 = vmul.f32 %v1294, %v1536
        %v1554 = vmul.f32 %v1309, %v1536
        %v1555 = vmul.f32 %v1324, %v1536
        %v1556 = vmul.f32 %v1339, %v1536
        %v1557 = vmul.f32 %v1354, %v1536
        %v1558 = vmul.f32 %v1369, %v1536
        %v1559 = vmul.f32 %v1384, %v1536
        %v1560 = vmul.f32 %v1399, %v1536
        %v1561 = vmul.f32 %v1414, %v1536
        %v1562 = vmul.f32 %v1429, %v1536
        %v1563 = vmul.f32 %v1444, %v1536
        %v1564 = vmul.f32 %v1459, %v1536
        %v1565 = vmul.f32 %v1474, %v1536
        %v1566 = vmul.f32 %v1489, %v1536
        %v1567 = vmul.f32 %v1504, %v1536
        %v1568 = vmul.f32 %v1519, %v1536
        %v1569 = vmul.f32 %v1534, %v1536
        %v1571 = vperm.slane %v343, 0
        %v1573 = vadd.f32 %v1538, %v1571
        %v1574 = vadd.f32 %v1539, %v1571
        %v1575 = vadd.f32 %v1540, %v1571
        %v1576 = vadd.f32 %v1541, %v1571
        %v1577 = vadd.f32 %v1542, %v1571
        %v1578 = vadd.f32 %v1543, %v1571
        %v1579 = vadd.f32 %v1544, %v1571
        %v1580 = vadd.f32 %v1545, %v1571
        %v1581 = vadd.f32 %v1546, %v1571
        %v1582 = vadd.f32 %v1547, %v1571
        %v1583 = vadd.f32 %v1548, %v1571
        %v1584 = vadd.f32 %v1549, %v1571
        %v1585 = vadd.f32 %v1550, %v1571
        %v1586 = vadd.f32 %v1551, %v1571
        %v1587 = vadd.f32 %v1552, %v1571
        %v1588 = vadd.f32 %v1553, %v1571
        %v1589 = vadd.f32 %v1554, %v1571
        %v1590 = vadd.f32 %v1555, %v1571
        %v1591 = vadd.f32 %v1556, %v1571
        %v1592 = vadd.f32 %v1557, %v1571
        %v1593 = vadd.f32 %v1558, %v1571
        %v1594 = vadd.f32 %v1559, %v1571
        %v1595 = vadd.f32 %v1560, %v1571
        %v1596 = vadd.f32 %v1561, %v1571
        %v1597 = vadd.f32 %v1562, %v1571
        %v1598 = vadd.f32 %v1563, %v1571
        %v1599 = vadd.f32 %v1564, %v1571
        %v1600 = vadd.f32 %v1565, %v1571
        %v1601 = vadd.f32 %v1566, %v1571
        %v1602 = vadd.f32 %v1567, %v1571
        %v1603 = vadd.f32 %v1568, %v1571
        %v1604 = vadd.f32 %v1569, %v1571
        %v1605 = vpack.c.bf16 %v1574, %v1573
        %v1606 = vpack.c.bf16 %v1576, %v1575
        %v1607 = vpack.c.bf16 %v1578, %v1577
        %v1608 = vpack.c.bf16 %v1580, %v1579
        %v1609 = vpack.c.bf16 %v1582, %v1581
        %v1610 = vpack.c.bf16 %v1584, %v1583
        %v1611 = vpack.c.bf16 %v1586, %v1585
        %v1612 = vpack.c.bf16 %v1588, %v1587
        %v1613 = vpack.c.bf16 %v1590, %v1589
        %v1614 = vpack.c.bf16 %v1592, %v1591
        %v1615 = vpack.c.bf16 %v1594, %v1593
        %v1616 = vpack.c.bf16 %v1596, %v1595
        %v1617 = vpack.c.bf16 %v1598, %v1597
        %v1618 = vpack.c.bf16 %v1600, %v1599
        %v1619 = vpack.c.bf16 %v1602, %v1601
        %v1620 = vpack.c.bf16 %v1604, %v1603
        %v1621 = vld [vmem:[#allocation7] sm:$0xff]
        %v1622 = vld [vmem:[#allocation7 + $0x8] sm:$0xf]
        %v1623 = vld [vmem:[#allocation7 + $0xc] sm:$0xff]
        %v1624 = vld [vmem:[#allocation7 + $0x14] sm:$0xf]
        %v1625 = vld [vmem:[#allocation7 + $0x18] sm:$0xff]
        %v1626 = vld [vmem:[#allocation7 + $0x20] sm:$0xf]
        %v1627 = vld [vmem:[#allocation7 + $0x24] sm:$0xff]
        %v1628 = vld [vmem:[#allocation7 + $0x2c] sm:$0xf]
        %v1629 = vld [vmem:[#allocation7 + $0x30] sm:$0xff]
        %v1630 = vld [vmem:[#allocation7 + $0x38] sm:$0xf]
        %v1631 = vld [vmem:[#allocation7 + $0x3c] sm:$0xff]
        %v1632 = vld [vmem:[#allocation7 + $0x44] sm:$0xf]
        %v1633 = vld [vmem:[#allocation7 + $0x48] sm:$0xff]
        %v1634 = vld [vmem:[#allocation7 + $0x50] sm:$0xf]
        %v1635 = vld [vmem:[#allocation7 + $0x54] sm:$0xff]
        %v1636 = vld [vmem:[#allocation7 + $0x5c] sm:$0xf]
        %v1637 = vld [vmem:[#allocation7 + $0x60] sm:$0xff]
        %v1638 = vld [vmem:[#allocation7 + $0x68] sm:$0xf]
        %v1639 = vld [vmem:[#allocation7 + $0x6c] sm:$0xff]
        %v1640 = vld [vmem:[#allocation7 + $0x74] sm:$0xf]
        %v1641 = vld [vmem:[#allocation7 + $0x78] sm:$0xff]
        %v1642 = vld [vmem:[#allocation7 + $0x80] sm:$0xf]
        %v1643 = vld [vmem:[#allocation7 + $0x84] sm:$0xff]
        %v1644 = vld [vmem:[#allocation7 + $0x8c] sm:$0xf]
        %v1645 = vld [vmem:[#allocation7 + $0x90] sm:$0xff]
        %v1646 = vld [vmem:[#allocation7 + $0x98] sm:$0xf]
        %v1647 = vld [vmem:[#allocation7 + $0x9c] sm:$0xff]
        %v1648 = vld [vmem:[#allocation7 + $0xa4] sm:$0xf]
        %v1649 = vld [vmem:[#allocation7 + $0xa8] sm:$0xff]
        %v1650 = vld [vmem:[#allocation7 + $0xb0] sm:$0xf]
        %v1651 = vld [vmem:[#allocation7 + $0xb4] sm:$0xff]
        %v1652 = vld [vmem:[#allocation7 + $0xbc] sm:$0xf]
        %v1685 = vunpack.c.l.b16 %v1621
        %v1686 = vunpack.c.h.b16 %v1621
        %v1687 = vunpack.c.l.b16 %v1622
        %v1688 = vunpack.c.l.b16 %v1623
        %v1689 = vunpack.c.h.b16 %v1623
        %v1690 = vunpack.c.l.b16 %v1624
        %v1691 = vunpack.c.l.b16 %v1625
        %v1692 = vunpack.c.h.b16 %v1625
        %v1693 = vunpack.c.l.b16 %v1626
        %v1694 = vunpack.c.l.b16 %v1627
        %v1695 = vunpack.c.h.b16 %v1627
        %v1696 = vunpack.c.l.b16 %v1628
        %v1697 = vunpack.c.l.b16 %v1629
        %v1698 = vunpack.c.h.b16 %v1629
        %v1699 = vunpack.c.l.b16 %v1630
        %v1700 = vunpack.c.l.b16 %v1631
        %v1701 = vunpack.c.h.b16 %v1631
        %v1702 = vunpack.c.l.b16 %v1632
        %v1703 = vunpack.c.l.b16 %v1633
        %v1704 = vunpack.c.h.b16 %v1633
        %v1705 = vunpack.c.l.b16 %v1634
        %v1706 = vunpack.c.l.b16 %v1635
        %v1707 = vunpack.c.h.b16 %v1635
        %v1708 = vunpack.c.l.b16 %v1636
        %v1709 = vunpack.c.l.b16 %v1637
        %v1710 = vunpack.c.h.b16 %v1637
        %v1711 = vunpack.c.l.b16 %v1638
        %v1712 = vunpack.c.l.b16 %v1639
        %v1713 = vunpack.c.h.b16 %v1639
        %v1714 = vunpack.c.l.b16 %v1640
        %v1715 = vunpack.c.l.b16 %v1641
        %v1716 = vunpack.c.h.b16 %v1641
        %v1717 = vunpack.c.l.b16 %v1642
        %v1718 = vunpack.c.l.b16 %v1643
        %v1719 = vunpack.c.h.b16 %v1643
        %v1720 = vunpack.c.l.b16 %v1644
        %v1721 = vunpack.c.l.b16 %v1645
        %v1722 = vunpack.c.h.b16 %v1645
        %v1723 = vunpack.c.l.b16 %v1646
        %v1724 = vunpack.c.l.b16 %v1647
        %v1725 = vunpack.c.h.b16 %v1647
        %v1726 = vunpack.c.l.b16 %v1648
        %v1727 = vunpack.c.l.b16 %v1649
        %v1728 = vunpack.c.h.b16 %v1649
        %v1729 = vunpack.c.l.b16 %v1650
        %v1730 = vunpack.c.l.b16 %v1651
        %v1731 = vunpack.c.h.b16 %v1651
        %v1732 = vunpack.c.l.b16 %v1652
        %v1733 = vpack.c.b16 %v1688, %v1685
        %v1734 = vpack.c.b16 %v1689, %v1686
        %v1735 = vpack.c.b16 %v1690, %v1687
        %v1736 = vpack.c.b16 %v1694, %v1691
        %v1737 = vpack.c.b16 %v1695, %v1692
        %v1738 = vpack.c.b16 %v1696, %v1693
        %v1739 = vpack.c.b16 %v1700, %v1697
        %v1740 = vpack.c.b16 %v1701, %v1698
        %v1741 = vpack.c.b16 %v1702, %v1699
        %v1742 = vpack.c.b16 %v1706, %v1703
        %v1743 = vpack.c.b16 %v1707, %v1704
        %v1744 = vpack.c.b16 %v1708, %v1705
        %v1745 = vpack.c.b16 %v1712, %v1709
        %v1746 = vpack.c.b16 %v1713, %v1710
        %v1747 = vpack.c.b16 %v1714, %v1711
        %v1748 = vpack.c.b16 %v1718, %v1715
        %v1749 = vpack.c.b16 %v1719, %v1716
        %v1750 = vpack.c.b16 %v1720, %v1717
        %v1751 = vpack.c.b16 %v1724, %v1721
        %v1752 = vpack.c.b16 %v1725, %v1722
        %v1753 = vpack.c.b16 %v1726, %v1723
        %v1754 = vpack.c.b16 %v1730, %v1727
        %v1755 = vpack.c.b16 %v1731, %v1728
        %v1756 = vpack.c.b16 %v1732, %v1729
        %1781 = vmatpush.bf16.msra.mxu0 %v1754
        %1782 = vmatpush.bf16.msra.mxu0 %v1751
        %1783 = vmatpush.bf16.msra.mxu0 %v1748
        %1784 = vmatpush.bf16.msra.mxu0 %v1745
        %1785 = vmatpush.bf16.msra.mxu0 %v1742
        %1786 = vmatpush.bf16.msra.mxu0 %v1739
        %1787 = vmatpush.bf16.msra.mxu0 %v1736
        %1788 = vmatpush.bf16.msra.mxu0 %v1733
        %1789 = vmatmul.bf16.gmra.mxu0 %v1605
        %v1790 = vpop.f32.mrf.mxu0
        %v1791 = vadd.f32 0.0, %v1790
        %v1792 = vpop.f32.mrf.mxu0
        %v1793 = vadd.f32 0.0, %v1792
        %1794 = vmatmul.bf16.gmra.mxu0 %v1606
        %v1795 = vpop.f32.mrf.mxu0
        %v1796 = vadd.f32 0.0, %v1795
        %v1797 = vpop.f32.mrf.mxu0
        %v1798 = vadd.f32 0.0, %v1797
        %1799 = vmatmul.bf16.gmra.mxu0 %v1607
        %v1800 = vpop.f32.mrf.mxu0
        %v1801 = vadd.f32 0.0, %v1800
        %v1802 = vpop.f32.mrf.mxu0
        %v1803 = vadd.f32 0.0, %v1802
        %1804 = vmatmul.bf16.gmra.mxu0 %v1608
        %v1805 = vpop.f32.mrf.mxu0
        %v1806 = vadd.f32 0.0, %v1805
        %v1807 = vpop.f32.mrf.mxu0
        %v1808 = vadd.f32 0.0, %v1807
        %1809 = vmatmul.bf16.gmra.mxu0 %v1609
        %v1810 = vpop.f32.mrf.mxu0
        %v1811 = vadd.f32 0.0, %v1810
        %v1812 = vpop.f32.mrf.mxu0
        %v1813 = vadd.f32 0.0, %v1812
        %1814 = vmatmul.bf16.gmra.mxu0 %v1610
        %v1815 = vpop.f32.mrf.mxu0
        %v1816 = vadd.f32 0.0, %v1815
        %v1817 = vpop.f32.mrf.mxu0
        %v1818 = vadd.f32 0.0, %v1817
        %1819 = vmatmul.bf16.gmra.mxu0 %v1611
        %v1820 = vpop.f32.mrf.mxu0
        %v1821 = vadd.f32 0.0, %v1820
        %v1822 = vpop.f32.mrf.mxu0
        %v1823 = vadd.f32 0.0, %v1822
        %1824 = vmatmul.bf16.gmra.mxu0 %v1612
        %v1825 = vpop.f32.mrf.mxu0
        %v1826 = vadd.f32 0.0, %v1825
        %v1827 = vpop.f32.mrf.mxu0
        %v1828 = vadd.f32 0.0, %v1827
        %1829 = vmatmul.bf16.gmra.mxu0 %v1613
        %v1830 = vpop.f32.mrf.mxu0
        %v1831 = vadd.f32 0.0, %v1830
        %v1832 = vpop.f32.mrf.mxu0
        %v1833 = vadd.f32 0.0, %v1832
        %1834 = vmatmul.bf16.gmra.mxu0 %v1614
        %v1835 = vpop.f32.mrf.mxu0
        %v1836 = vadd.f32 0.0, %v1835
        %v1837 = vpop.f32.mrf.mxu0
        %v1838 = vadd.f32 0.0, %v1837
        %1839 = vmatmul.bf16.gmra.mxu0 %v1615
        %v1840 = vpop.f32.mrf.mxu0
        %v1841 = vadd.f32 0.0, %v1840
        %v1842 = vpop.f32.mrf.mxu0
        %v1843 = vadd.f32 0.0, %v1842
        %1844 = vmatmul.bf16.gmra.mxu0 %v1616
        %v1845 = vpop.f32.mrf.mxu0
        %v1846 = vadd.f32 0.0, %v1845
        %v1847 = vpop.f32.mrf.mxu0
        %v1848 = vadd.f32 0.0, %v1847
        %1849 = vmatmul.bf16.gmra.mxu0 %v1617
        %v1850 = vpop.f32.mrf.mxu0
        %v1851 = vadd.f32 0.0, %v1850
        %v1852 = vpop.f32.mrf.mxu0
        %v1853 = vadd.f32 0.0, %v1852
        %1854 = vmatmul.bf16.gmra.mxu0 %v1618
        %v1855 = vpop.f32.mrf.mxu0
        %v1856 = vadd.f32 0.0, %v1855
        %v1857 = vpop.f32.mrf.mxu0
        %v1858 = vadd.f32 0.0, %v1857
        %1859 = vmatmul.bf16.gmra.mxu0 %v1619
        %v1860 = vpop.f32.mrf.mxu0
        %v1861 = vadd.f32 0.0, %v1860
        %v1862 = vpop.f32.mrf.mxu0
        %v1863 = vadd.f32 0.0, %v1862
        %1864 = vmatmul.bf16.gmra.mxu0 %v1620
        %v1865 = vpop.f32.mrf.mxu0
        %v1866 = vadd.f32 0.0, %v1865
        %v1867 = vpop.f32.mrf.mxu0
        %v1868 = vadd.f32 0.0, %v1867
        %1869 = vdwg.mxu0
        %1870 = vmatpush.bf16.msra.mxu0 %v1755
        %1871 = vmatpush.bf16.msra.mxu0 %v1752
        %1872 = vmatpush.bf16.msra.mxu0 %v1749
        %1873 = vmatpush.bf16.msra.mxu0 %v1746
        %1874 = vmatpush.bf16.msra.mxu0 %v1743
        %1875 = vmatpush.bf16.msra.mxu0 %v1740
        %1876 = vmatpush.bf16.msra.mxu0 %v1737
        %1877 = vmatpush.bf16.msra.mxu0 %v1734
        %1878 = vmatmul.bf16.gmra.mxu0 %v1605
        %v1879 = vpop.f32.mrf.mxu0
        %v1880 = vadd.f32 0.0, %v1879
        %v1881 = vpop.f32.mrf.mxu0
        %v1882 = vadd.f32 0.0, %v1881
        %1883 = vmatmul.bf16.gmra.mxu0 %v1606
        %v1884 = vpop.f32.mrf.mxu0
        %v1885 = vadd.f32 0.0, %v1884
        %v1886 = vpop.f32.mrf.mxu0
        %v1887 = vadd.f32 0.0, %v1886
        %1888 = vmatmul.bf16.gmra.mxu0 %v1607
        %v1889 = vpop.f32.mrf.mxu0
        %v1890 = vadd.f32 0.0, %v1889
        %v1891 = vpop.f32.mrf.mxu0
        %v1892 = vadd.f32 0.0, %v1891
        %1893 = vmatmul.bf16.gmra.mxu0 %v1608
        %v1894 = vpop.f32.mrf.mxu0
        %v1895 = vadd.f32 0.0, %v1894
        %v1896 = vpop.f32.mrf.mxu0
        %v1897 = vadd.f32 0.0, %v1896
        %1898 = vmatmul.bf16.gmra.mxu0 %v1609
        %v1899 = vpop.f32.mrf.mxu0
        %v1900 = vadd.f32 0.0, %v1899
        %v1901 = vpop.f32.mrf.mxu0
        %v1902 = vadd.f32 0.0, %v1901
        %1903 = vmatmul.bf16.gmra.mxu0 %v1610
        %v1904 = vpop.f32.mrf.mxu0
        %v1905 = vadd.f32 0.0, %v1904
        %v1906 = vpop.f32.mrf.mxu0
        %v1907 = vadd.f32 0.0, %v1906
        %1908 = vmatmul.bf16.gmra.mxu0 %v1611
        %v1909 = vpop.f32.mrf.mxu0
        %v1910 = vadd.f32 0.0, %v1909
        %v1911 = vpop.f32.mrf.mxu0
        %v1912 = vadd.f32 0.0, %v1911
        %1913 = vmatmul.bf16.gmra.mxu0 %v1612
        %v1914 = vpop.f32.mrf.mxu0
        %v1915 = vadd.f32 0.0, %v1914
        %v1916 = vpop.f32.mrf.mxu0
        %v1917 = vadd.f32 0.0, %v1916
        %1918 = vmatmul.bf16.gmra.mxu0 %v1613
        %v1919 = vpop.f32.mrf.mxu0
        %v1920 = vadd.f32 0.0, %v1919
        %v1921 = vpop.f32.mrf.mxu0
        %v1922 = vadd.f32 0.0, %v1921
        %1923 = vmatmul.bf16.gmra.mxu0 %v1614
        %v1924 = vpop.f32.mrf.mxu0
        %v1925 = vadd.f32 0.0, %v1924
        %v1926 = vpop.f32.mrf.mxu0
        %v1927 = vadd.f32 0.0, %v1926
        %1928 = vmatmul.bf16.gmra.mxu0 %v1615
        %v1929 = vpop.f32.mrf.mxu0
        %v1930 = vadd.f32 0.0, %v1929
        %v1931 = vpop.f32.mrf.mxu0
        %v1932 = vadd.f32 0.0, %v1931
        %1933 = vmatmul.bf16.gmra.mxu0 %v1616
        %v1934 = vpop.f32.mrf.mxu0
        %v1935 = vadd.f32 0.0, %v1934
        %v1936 = vpop.f32.mrf.mxu0
        %v1937 = vadd.f32 0.0, %v1936
        %1938 = vmatmul.bf16.gmra.mxu0 %v1617
        %v1939 = vpop.f32.mrf.mxu0
        %v1940 = vadd.f32 0.0, %v1939
        %v1941 = vpop.f32.mrf.mxu0
        %v1942 = vadd.f32 0.0, %v1941
        %1943 = vmatmul.bf16.gmra.mxu0 %v1618
        %v1944 = vpop.f32.mrf.mxu0
        %v1945 = vadd.f32 0.0, %v1944
        %v1946 = vpop.f32.mrf.mxu0
        %v1947 = vadd.f32 0.0, %v1946
        %1948 = vmatmul.bf16.gmra.mxu0 %v1619
        %v1949 = vpop.f32.mrf.mxu0
        %v1950 = vadd.f32 0.0, %v1949
        %v1951 = vpop.f32.mrf.mxu0
        %v1952 = vadd.f32 0.0, %v1951
        %1953 = vmatmul.bf16.gmra.mxu0 %v1620
        %v1954 = vpop.f32.mrf.mxu0
        %v1955 = vadd.f32 0.0, %v1954
        %v1956 = vpop.f32.mrf.mxu0
        %v1957 = vadd.f32 0.0, %v1956
        %1958 = vdwg.mxu0
        %1959 = vmatpush.bf16.msra.mxu0 %v1756
        %1960 = vmatpush.bf16.msra.mxu0 %v1753
        %1961 = vmatpush.bf16.msra.mxu0 %v1750
        %1962 = vmatpush.bf16.msra.mxu0 %v1747
        %1963 = vmatpush.bf16.msra.mxu0 %v1744
        %1964 = vmatpush.bf16.msra.mxu0 %v1741
        %1965 = vmatpush.bf16.msra.mxu0 %v1738
        %1966 = vmatpush.bf16.msra.mxu0 %v1735
        %1967 = vmatmul.bf16.gmra.mxu0 %v1605
        %v1968 = vpop.f32.mrf.mxu0
        %v1969 = vadd.f32 0.0, %v1968
        %v1970 = vpop.f32.mrf.mxu0
        %v1971 = vadd.f32 0.0, %v1970
        %1972 = vmatmul.bf16.gmra.mxu0 %v1606
        %v1973 = vpop.f32.mrf.mxu0
        %v1974 = vadd.f32 0.0, %v1973
        %v1975 = vpop.f32.mrf.mxu0
        %v1976 = vadd.f32 0.0, %v1975
        %1977 = vmatmul.bf16.gmra.mxu0 %v1607
        %v1978 = vpop.f32.mrf.mxu0
        %v1979 = vadd.f32 0.0, %v1978
        %v1980 = vpop.f32.mrf.mxu0
        %v1981 = vadd.f32 0.0, %v1980
        %1982 = vmatmul.bf16.gmra.mxu0 %v1608
        %v1983 = vpop.f32.mrf.mxu0
        %v1984 = vadd.f32 0.0, %v1983
        %v1985 = vpop.f32.mrf.mxu0
        %v1986 = vadd.f32 0.0, %v1985
        %1987 = vmatmul.bf16.gmra.mxu0 %v1609
        %v1988 = vpop.f32.mrf.mxu0
        %v1989 = vadd.f32 0.0, %v1988
        %v1990 = vpop.f32.mrf.mxu0
        %v1991 = vadd.f32 0.0, %v1990
        %1992 = vmatmul.bf16.gmra.mxu0 %v1610
        %v1993 = vpop.f32.mrf.mxu0
        %v1994 = vadd.f32 0.0, %v1993
        %v1995 = vpop.f32.mrf.mxu0
        %v1996 = vadd.f32 0.0, %v1995
        %1997 = vmatmul.bf16.gmra.mxu0 %v1611
        %v1998 = vpop.f32.mrf.mxu0
        %v1999 = vadd.f32 0.0, %v1998
        %v2000 = vpop.f32.mrf.mxu0
        %v2001 = vadd.f32 0.0, %v2000
        %2002 = vmatmul.bf16.gmra.mxu0 %v1612
        %v2003 = vpop.f32.mrf.mxu0
        %v2004 = vadd.f32 0.0, %v2003
        %v2005 = vpop.f32.mrf.mxu0
        %v2006 = vadd.f32 0.0, %v2005
        %2007 = vmatmul.bf16.gmra.mxu0 %v1613
        %v2008 = vpop.f32.mrf.mxu0
        %v2009 = vadd.f32 0.0, %v2008
        %v2010 = vpop.f32.mrf.mxu0
        %v2011 = vadd.f32 0.0, %v2010
        %2012 = vmatmul.bf16.gmra.mxu0 %v1614
        %v2013 = vpop.f32.mrf.mxu0
        %v2014 = vadd.f32 0.0, %v2013
        %v2015 = vpop.f32.mrf.mxu0
        %v2016 = vadd.f32 0.0, %v2015
        %2017 = vmatmul.bf16.gmra.mxu0 %v1615
        %v2018 = vpop.f32.mrf.mxu0
        %v2019 = vadd.f32 0.0, %v2018
        %v2020 = vpop.f32.mrf.mxu0
        %v2021 = vadd.f32 0.0, %v2020
        %2022 = vmatmul.bf16.gmra.mxu0 %v1616
        %v2023 = vpop.f32.mrf.mxu0
        %v2024 = vadd.f32 0.0, %v2023
        %v2025 = vpop.f32.mrf.mxu0
        %v2026 = vadd.f32 0.0, %v2025
        %2027 = vmatmul.bf16.gmra.mxu0 %v1617
        %v2028 = vpop.f32.mrf.mxu0
        %v2029 = vadd.f32 0.0, %v2028
        %v2030 = vpop.f32.mrf.mxu0
        %v2031 = vadd.f32 0.0, %v2030
        %2032 = vmatmul.bf16.gmra.mxu0 %v1618
        %v2033 = vpop.f32.mrf.mxu0
        %v2034 = vadd.f32 0.0, %v2033
        %v2035 = vpop.f32.mrf.mxu0
        %v2036 = vadd.f32 0.0, %v2035
        %2037 = vmatmul.bf16.gmra.mxu0 %v1619
        %v2038 = vpop.f32.mrf.mxu0
        %v2039 = vadd.f32 0.0, %v2038
        %v2040 = vpop.f32.mrf.mxu0
        %v2041 = vadd.f32 0.0, %v2040
        %2042 = vmatmul.bf16.gmra.mxu0 %v1620
        %v2043 = vpop.f32.mrf.mxu0
        %v2044 = vadd.f32 0.0, %v2043
        %v2045 = vpop.f32.mrf.mxu0
        %v2046 = vadd.f32 0.0, %v2045
        %2047 = vdwg.mxu0
        %v2048 = vpack.c.bf16 %v1880, %v1791
        %v2049 = vpack.c.bf16 %v1969, %v1969
        %v2050 = vpack.c.bf16 %v1882, %v1793
        %v2051 = vpack.c.bf16 %v1971, %v1971
        %v2052 = vpack.c.bf16 %v1885, %v1796
        %v2053 = vpack.c.bf16 %v1974, %v1974
        %v2054 = vpack.c.bf16 %v1887, %v1798
        %v2055 = vpack.c.bf16 %v1976, %v1976
        %v2056 = vpack.c.bf16 %v1890, %v1801
        %v2057 = vpack.c.bf16 %v1979, %v1979
        %v2058 = vpack.c.bf16 %v1892, %v1803
        %v2059 = vpack.c.bf16 %v1981, %v1981
        %v2060 = vpack.c.bf16 %v1895, %v1806
        %v2061 = vpack.c.bf16 %v1984, %v1984
        %v2062 = vpack.c.bf16 %v1897, %v1808
        %v2063 = vpack.c.bf16 %v1986, %v1986
        %v2064 = vpack.c.bf16 %v1900, %v1811
        %v2065 = vpack.c.bf16 %v1989, %v1989
        %v2066 = vpack.c.bf16 %v1902, %v1813
        %v2067 = vpack.c.bf16 %v1991, %v1991
        %v2068 = vpack.c.bf16 %v1905, %v1816
        %v2069 = vpack.c.bf16 %v1994, %v1994
        %v2070 = vpack.c.bf16 %v1907, %v1818
        %v2071 = vpack.c.bf16 %v1996, %v1996
        %v2072 = vpack.c.bf16 %v1910, %v1821
        %v2073 = vpack.c.bf16 %v1999, %v1999
        %v2074 = vpack.c.bf16 %v1912, %v1823
        %v2075 = vpack.c.bf16 %v2001, %v2001
        %v2076 = vpack.c.bf16 %v1915, %v1826
        %v2077 = vpack.c.bf16 %v2004, %v2004
        %v2078 = vpack.c.bf16 %v1917, %v1828
        %v2079 = vpack.c.bf16 %v2006, %v2006
        %v2080 = vpack.c.bf16 %v1920, %v1831
        %v2081 = vpack.c.bf16 %v2009, %v2009
        %v2082 = vpack.c.bf16 %v1922, %v1833
        %v2083 = vpack.c.bf16 %v2011, %v2011
        %v2084 = vpack.c.bf16 %v1925, %v1836
        %v2085 = vpack.c.bf16 %v2014, %v2014
        %v2086 = vpack.c.bf16 %v1927, %v1838
        %v2087 = vpack.c.bf16 %v2016, %v2016
        %v2088 = vpack.c.bf16 %v1930, %v1841
        %v2089 = vpack.c.bf16 %v2019, %v2019
        %v2090 = vpack.c.bf16 %v1932, %v1843
        %v2091 = vpack.c.bf16 %v2021, %v2021
        %v2092 = vpack.c.bf16 %v1935, %v1846
        %v2093 = vpack.c.bf16 %v2024, %v2024
        %v2094 = vpack.c.bf16 %v1937, %v1848
        %v2095 = vpack.c.bf16 %v2026, %v2026
        %v2096 = vpack.c.bf16 %v1940, %v1851
        %v2097 = vpack.c.bf16 %v2029, %v2029
        %v2098 = vpack.c.bf16 %v1942, %v1853
        %v2099 = vpack.c.bf16 %v2031, %v2031
        %v2100 = vpack.c.bf16 %v1945, %v1856
        %v2101 = vpack.c.bf16 %v2034, %v2034
        %v2102 = vpack.c.bf16 %v1947, %v1858
        %v2103 = vpack.c.bf16 %v2036, %v2036
        %v2104 = vpack.c.bf16 %v1950, %v1861
        %v2105 = vpack.c.bf16 %v2039, %v2039
        %v2106 = vpack.c.bf16 %v1952, %v1863
        %v2107 = vpack.c.bf16 %v2041, %v2041
        %v2108 = vpack.c.bf16 %v1955, %v1866
        %v2109 = vpack.c.bf16 %v2044, %v2044
        %v2110 = vpack.c.bf16 %v1957, %v1868
        %v2111 = vpack.c.bf16 %v2046, %v2046
        %2112 = vst [vmem:[%s299] sm:$0xf] %v2048
        %2113 = vst [vmem:[%s299 + $0x4] sm:$0xf] %v2050
        %2114 = vst [vmem:[%s299 + $0x8] sm:$0xf] %v2052
        %2115 = vst [vmem:[%s299 + $0xc] sm:$0xf] %v2054
        %2116 = vst [vmem:[%s299 + $0x10] sm:$0xf] %v2056
        %2117 = vst [vmem:[%s299 + $0x14] sm:$0xf] %v2058
        %2118 = vst [vmem:[%s299 + $0x18] sm:$0xf] %v2060
        %2119 = vst [vmem:[%s299 + $0x1c] sm:$0xf] %v2062
        %2120 = vst [vmem:[%s299 + $0x20] sm:$0xf] %v2064
        %2121 = vst [vmem:[%s299 + $0x24] sm:$0xf] %v2066
        %2122 = vst [vmem:[%s299 + $0x28] sm:$0xf] %v2068
        %2123 = vst [vmem:[%s299 + $0x2c] sm:$0xf] %v2070
        %2124 = vst [vmem:[%s299 + $0x30] sm:$0xf] %v2072
        %2125 = vst [vmem:[%s299 + $0x34] sm:$0xf] %v2074
        %2126 = vst [vmem:[%s299 + $0x38] sm:$0xf] %v2076
        %2127 = vst [vmem:[%s299 + $0x3c] sm:$0xf] %v2078
        %2128 = vst [vmem:[%s299 + $0x40] sm:$0xf] %v2080
        %2129 = vst [vmem:[%s299 + $0x44] sm:$0xf] %v2082
        %2130 = vst [vmem:[%s299 + $0x48] sm:$0xf] %v2084
        %2131 = vst [vmem:[%s299 + $0x4c] sm:$0xf] %v2086
        %2132 = vst [vmem:[%s299 + $0x50] sm:$0xf] %v2088
        %2133 = vst [vmem:[%s299 + $0x54] sm:$0xf] %v2090
        %2134 = vst [vmem:[%s299 + $0x58] sm:$0xf] %v2092
        %2135 = vst [vmem:[%s299 + $0x5c] sm:$0xf] %v2094
        %2136 = vst [vmem:[%s299 + $0x60] sm:$0xf] %v2096
        %2137 = vst [vmem:[%s299 + $0x64] sm:$0xf] %v2098
        %2138 = vst [vmem:[%s299 + $0x68] sm:$0xf] %v2100
        %2139 = vst [vmem:[%s299 + $0x6c] sm:$0xf] %v2102
        %2140 = vst [vmem:[%s299 + $0x70] sm:$0xf] %v2104
        %2141 = vst [vmem:[%s299 + $0x74] sm:$0xf] %v2106
        %2142 = vst [vmem:[%s299 + $0x78] sm:$0xf] %v2108
        %2143 = vst [vmem:[%s299 + $0x7c] sm:$0xf] %v2110
        %v2208 = vrot.slane %v2048, 4
        %v2209 = vrot.slane %v2049, 4
        %v2210 = vrot.slane %v2050, 4
        %v2211 = vrot.slane %v2051, 4
        %v2212 = vrot.slane %v2052, 4
        %v2213 = vrot.slane %v2053, 4
        %v2214 = vrot.slane %v2054, 4
        %v2215 = vrot.slane %v2055, 4
        %v2216 = vrot.slane %v2056, 4
        %v2217 = vrot.slane %v2057, 4
        %v2218 = vrot.slane %v2058, 4
        %v2219 = vrot.slane %v2059, 4
        %v2220 = vrot.slane %v2060, 4
        %v2221 = vrot.slane %v2061, 4
        %v2222 = vrot.slane %v2062, 4
        %v2223 = vrot.slane %v2063, 4
        %v2224 = vrot.slane %v2064, 4
        %v2225 = vrot.slane %v2065, 4
        %v2226 = vrot.slane %v2066, 4
        %v2227 = vrot.slane %v2067, 4
        %v2228 = vrot.slane %v2068, 4
        %v2229 = vrot.slane %v2069, 4
        %v2230 = vrot.slane %v2070, 4
        %v2231 = vrot.slane %v2071, 4
        %v2232 = vrot.slane %v2072, 4
        %v2233 = vrot.slane %v2073, 4
        %v2234 = vrot.slane %v2074, 4
        %v2235 = vrot.slane %v2075, 4
        %v2236 = vrot.slane %v2076, 4
        %v2237 = vrot.slane %v2077, 4
        %v2238 = vrot.slane %v2078, 4
        %v2239 = vrot.slane %v2079, 4
        %v2240 = vrot.slane %v2080, 4
        %v2241 = vrot.slane %v2081, 4
        %v2242 = vrot.slane %v2082, 4
        %v2243 = vrot.slane %v2083, 4
        %v2244 = vrot.slane %v2084, 4
        %v2245 = vrot.slane %v2085, 4
        %v2246 = vrot.slane %v2086, 4
        %v2247 = vrot.slane %v2087, 4
        %v2248 = vrot.slane %v2088, 4
        %v2249 = vrot.slane %v2089, 4
        %v2250 = vrot.slane %v2090, 4
        %v2251 = vrot.slane %v2091, 4
        %v2252 = vrot.slane %v2092, 4
        %v2253 = vrot.slane %v2093, 4
        %v2254 = vrot.slane %v2094, 4
        %v2255 = vrot.slane %v2095, 4
        %v2256 = vrot.slane %v2096, 4
        %v2257 = vrot.slane %v2097, 4
        %v2258 = vrot.slane %v2098, 4
        %v2259 = vrot.slane %v2099, 4
        %v2260 = vrot.slane %v2100, 4
        %v2261 = vrot.slane %v2101, 4
        %v2262 = vrot.slane %v2102, 4
        %v2263 = vrot.slane %v2103, 4
        %v2264 = vrot.slane %v2104, 4
        %v2265 = vrot.slane %v2105, 4
        %v2266 = vrot.slane %v2106, 4
        %v2267 = vrot.slane %v2107, 4
        %v2268 = vrot.slane %v2108, 4
        %v2269 = vrot.slane %v2109, 4
        %v2270 = vrot.slane %v2110, 4
        %v2271 = vrot.slane %v2111, 4
        %vm2272 = vcmask 1043456
        %v2273 = vsel %vm2272, %v2208, %v2209
        %v2274 = vsel %vm2272, %v2210, %v2211
        %v2275 = vsel %vm2272, %v2212, %v2213
        %v2276 = vsel %vm2272, %v2214, %v2215
        %v2277 = vsel %vm2272, %v2216, %v2217
        %v2278 = vsel %vm2272, %v2218, %v2219
        %v2279 = vsel %vm2272, %v2220, %v2221
        %v2280 = vsel %vm2272, %v2222, %v2223
        %v2281 = vsel %vm2272, %v2224, %v2225
        %v2282 = vsel %vm2272, %v2226, %v2227
        %v2283 = vsel %vm2272, %v2228, %v2229
        %v2284 = vsel %vm2272, %v2230, %v2231
        %v2285 = vsel %vm2272, %v2232, %v2233
        %v2286 = vsel %vm2272, %v2234, %v2235
        %v2287 = vsel %vm2272, %v2236, %v2237
        %v2288 = vsel %vm2272, %v2238, %v2239
        %v2289 = vsel %vm2272, %v2240, %v2241
        %v2290 = vsel %vm2272, %v2242, %v2243
        %v2291 = vsel %vm2272, %v2244, %v2245
        %v2292 = vsel %vm2272, %v2246, %v2247
        %v2293 = vsel %vm2272, %v2248, %v2249
        %v2294 = vsel %vm2272, %v2250, %v2251
        %v2295 = vsel %vm2272, %v2252, %v2253
        %v2296 = vsel %vm2272, %v2254, %v2255
        %v2297 = vsel %vm2272, %v2256, %v2257
        %v2298 = vsel %vm2272, %v2258, %v2259
        %v2299 = vsel %vm2272, %v2260, %v2261
        %v2300 = vsel %vm2272, %v2262, %v2263
        %v2301 = vsel %vm2272, %v2264, %v2265
        %v2302 = vsel %vm2272, %v2266, %v2267
        %v2303 = vsel %vm2272, %v2268, %v2269
        %v2304 = vsel %vm2272, %v2270, %v2271
        %2337 = vst [vmem:[%s306] sm:$0xff] %v2273
        %2338 = vst [vmem:[%s306 + $0x8] sm:$0xff] %v2274
        %2339 = vst [vmem:[%s306 + $0x10] sm:$0xff] %v2275
        %2340 = vst [vmem:[%s306 + $0x18] sm:$0xff] %v2276
        %2341 = vst [vmem:[%s306 + $0x20] sm:$0xff] %v2277
        %2342 = vst [vmem:[%s306 + $0x28] sm:$0xff] %v2278
        %2343 = vst [vmem:[%s306 + $0x30] sm:$0xff] %v2279
        %2344 = vst [vmem:[%s306 + $0x38] sm:$0xff] %v2280
        %2345 = vst [vmem:[%s306 + $0x40] sm:$0xff] %v2281
        %2346 = vst [vmem:[%s306 + $0x48] sm:$0xff] %v2282
        %2347 = vst [vmem:[%s306 + $0x50] sm:$0xff] %v2283
        %2348 = vst [vmem:[%s306 + $0x58] sm:$0xff] %v2284
        %2349 = vst [vmem:[%s306 + $0x60] sm:$0xff] %v2285
        %2350 = vst [vmem:[%s306 + $0x68] sm:$0xff] %v2286
        %2351 = vst [vmem:[%s306 + $0x70] sm:$0xff] %v2287
        %2352 = vst [vmem:[%s306 + $0x78] sm:$0xff] %v2288
        %2353 = vst [vmem:[%s306 + $0x80] sm:$0xff] %v2289
        %2354 = vst [vmem:[%s306 + $0x88] sm:$0xff] %v2290
        %2355 = vst [vmem:[%s306 + $0x90] sm:$0xff] %v2291
        %2356 = vst [vmem:[%s306 + $0x98] sm:$0xff] %v2292
        %2357 = vst [vmem:[%s306 + $0xa0] sm:$0xff] %v2293
        %2358 = vst [vmem:[%s306 + $0xa8] sm:$0xff] %v2294
        %2359 = vst [vmem:[%s306 + $0xb0] sm:$0xff] %v2295
        %2360 = vst [vmem:[%s306 + $0xb8] sm:$0xff] %v2296
        %2361 = vst [vmem:[%s306 + $0xc0] sm:$0xff] %v2297
        %2362 = vst [vmem:[%s306 + $0xc8] sm:$0xff] %v2298
        %2363 = vst [vmem:[%s306 + $0xd0] sm:$0xff] %v2299
        %2364 = vst [vmem:[%s306 + $0xd8] sm:$0xff] %v2300
        %2365 = vst [vmem:[%s306 + $0xe0] sm:$0xff] %v2301
        %2366 = vst [vmem:[%s306 + $0xe8] sm:$0xff] %v2302
        %2367 = vst [vmem:[%s306 + $0xf0] sm:$0xff] %v2303
        %2368 = vst [vmem:[%s306 + $0xf8] sm:$0xff] %v2304
        %s2369 = sand.u32 %s140, 1
        %s2370 = scalar_lea.sflag [#allocation4], %s2369
        %s2371 = sand.u32 %s140, 1
        %s2372 = smul.addr %s2371, 128
        %s2373 = scalar_lea.vmem [#allocation8], %s2372
        %s2374 = sand.u32 %s168, 1
        %s2375 = scalar_lea.sflag [#allocation10], %s2374
        %s2376 = sand.u32 %s168, 1
        %s2377 = smul.addr %s2376, 256
        %s2378 = scalar_lea.vmem [#allocation9], %s2377
        // Predicated region
        $region49: #{tpu_custom_call.1} parent=35 // pred_check
          %p2379 = pneg %p150
        $region50: #{tpu_custom_call.1} parent=35 // pred_check_branch
          %2381 = sbr.rel (%p2379) target = $region52
        $region51: #{tpu_custom_call.1} parent=35 // pred_region
          %s2382 = smul.u32 32, %s32
          %2384 = vsyncadd %s2370, 0
          %s2385 = smul.addr %s31, 64
          %s2386 = sadd.s32 %s2382, %s2385
          %s2387 = smul.addr %s2386, 4
          %s2388 = scalar_lea.hbm %s4, %s2387
          %s2389 = sshll.u32 %s2373, 4
          %s2390 = int_to_ptr.vmem [resolvable:$true] %s2389
          %s2391 = sshll.u32 %s2388, 4
          %s2392 = int_to_ptr.hbm [resolvable:$true] %s2391
          %2397 = dma.vmem_to_hbm [thread:$0]  %s2390, 2048, %s2392, %s2370, 64, 64, 4
        $region52: #{tpu_custom_call.1} parent=35 // pred_fallthru
          _
        // Predicated region
        $region53: #{tpu_custom_call.1} parent=35 // pred_check
          %p2398 = pneg %p178
        $region54: #{tpu_custom_call.1} parent=35 // pred_check_branch
          %2400 = sbr.rel (%p2398) target = $region56
        $region55: #{tpu_custom_call.1} parent=35 // pred_region
          %s2401 = smul.u32 32, %s32
          %2403 = vsyncadd %s2375, 0
          %s2404 = smul.addr %s2401, 2
          %s2405 = smul.addr %s31, 128
          %s2406 = sadd.s32 %s2404, %s2405
          %s2407 = smul.addr %s2406, 4
          %s2408 = scalar_lea.hbm %s5, %s2407
          %s2409 = sshll.u32 %s2378, 4
          %s2410 = int_to_ptr.vmem [resolvable:$true] %s2409
          %s2411 = sshll.u32 %s2408, 4
          %s2412 = int_to_ptr.hbm [resolvable:$true] %s2411
          %2417 = dma.vmem_to_hbm [thread:$0]  %s2410, 4096, %s2412, %s2375, 128, 128, 8
        $region56: #{tpu_custom_call.1} parent=35 // pred_fallthru
          _
      $region36: #{tpu_custom_call.1} parent=5 // pred_fallthru
        _
      %p2418 = scmp.le.s32.totalorder 2, %s22
      // Predicated region
      $region57: #{tpu_custom_call.1} parent=5 // pred_check
        %p2419 = pneg %p2418
      $region58: #{tpu_custom_call.1} parent=5 // pred_check_branch
        %2421 = sbr.rel (%p2419) target = $region60
      $region59: #{tpu_custom_call.1} parent=5 // pred_region
        %s2422 = ssub.s32 %s22, 2
        // Predicated region
        $region61: #{tpu_custom_call.1} parent=59 // pred_check
          %p2423 = pneg %p156
        $region62: #{tpu_custom_call.1} parent=59 // pred_check_branch
          %2425 = sbr.rel (%p2423) target = $region64
        $region63: #{tpu_custom_call.1} parent=59 // pred_region
          %s2426 = sand.u32 %s141, 1
          %s2427 = scalar_lea.sflag [#allocation4], %s2426
          %s2428 = sand.u32 %s141, 1
          %s2429 = smul.addr %s2428, 128
          %s2430 = scalar_lea.vmem [#allocation8], %s2429
          %2432 = dma.done %s2427, 2048
        $region64: #{tpu_custom_call.1} parent=59 // pred_fallthru
          _
        // Predicated region
        $region65: #{tpu_custom_call.1} parent=59 // pred_check
          %p2433 = pneg %p184
        $region66: #{tpu_custom_call.1} parent=59 // pred_check_branch
          %2435 = sbr.rel (%p2433) target = $region68
        $region67: #{tpu_custom_call.1} parent=59 // pred_region
          %s2436 = sand.u32 %s169, 1
          %s2437 = scalar_lea.sflag [#allocation10], %s2436
          %s2438 = sand.u32 %s169, 1
          %s2439 = smul.addr %s2438, 256
          %s2440 = scalar_lea.vmem [#allocation9], %s2439
          %2442 = dma.done %s2437, 4096
        $region68: #{tpu_custom_call.1} parent=59 // pred_fallthru
          _
      $region60: #{tpu_custom_call.1} parent=5 // pred_fallthru
        _
    $region6: #{tpu_custom_call.1} parent=1 // loop_footer
      %s26 = sadd.s32 1, %s22
    $region7: #{tpu_custom_call.1} parent=1 // loop_footer_branch
      %21 = sbr.rel target = $region3
    $region8: #{tpu_custom_call.1} parent=1 // loop_exit
      _
    %2443 = vsyncpa [#allocation3], 1
    %s2444 = scalar_lea.sflag [#allocation3], 1
    %2445 = vsyncpa %s2444, 1
    %2446 = vsyncpa [#allocation6], 1
    %2447 = vsyncpa [#allocation4], 1
    %s2448 = scalar_lea.sflag [#allocation4], 1
    %2449 = vsyncpa %s2448, 1
    %2450 = vsyncpa [#allocation10], 1
    %s2451 = scalar_lea.sflag [#allocation10], 1
    %2452 = vsyncpa %s2451, 1

</llo_original>
